<compile_context>
chip_gen: v7x
topology: tpu7x:2x2x1
jax: 0.10.0
libtpu: 0.0.40
codegen_flags: <defaults>
</compile_context>

<pallas_src>
import functools

import jax
import jax.numpy as jnp
from jax.experimental import pallas as pl
from jax.experimental.pallas import tpu as pltpu

FEAT_DIM = 1280                 # EfficientNet-B0 head feature width
STEM_CH = 32                    # stem conv output channels
KSIZE, STRIDE, PAD = 3, 2, 1
KDIM = KSIZE * KSIZE            # 9 taps (1 input channel)
NUM_BRANCH = 3


def _round_up(x, m):
    return (x + m - 1) // m * m


def _choose_p_chunk(p, block_n, max_tile_elems):
    """Largest P-chunk that divides P, is a multiple of 128 (or == P), and keeps
    block_n * chunk <= max_tile_elems (bounds the f32 stem intermediate)."""
    limit = max(1, max_tile_elems // block_n)
    if p <= limit:
        return p
    c = (limit // 128) * 128
    while c >= 128:
        if p % c == 0:
            return c
        c -= 128
    return p    # no aligned divisor found: fall back to a single (large) chunk


# ----------------------------------------------------------------------------
# Fused Pallas kernel
# ----------------------------------------------------------------------------
def _fused_kernel(p_total, patch_ref, w_stem_ref, b_stem_ref, w_proj_ref,
                  b_proj_ref, w_fc_ref, out_ref, acc_ref):
    """One (image-block i, P-chunk j) grid step.

    patch_ref : [bn, 9, pc]   bf16  (lane-dense: spatial positions on lanes)
    w_stem_ref: [32, 9]       bf16     b_stem_ref: [32, 1]   f32
    w_proj_ref: [32, 1280]    bf16     b_proj_ref: [1, 1280] f32
    w_fc_ref  : [3, 1280]     bf16  (lane-dense fc slices)
    out_ref   : [bn, 3]       f32   per-image / per-branch partial logits
    acc_ref   : [bn, 32]      f32   GAP sum accumulator across P-chunks
    """
    j = pl.program_id(1)

    @pl.when(j == 0)
    def _():
        acc_ref[...] = jnp.zeros_like(acc_ref)

    patch = patch_ref[...]                                     # [bn, 9, pc]
    bn = patch.shape[0]

    # Stem conv: batched bf16 MXU matmul ('bij,bjk->bik') contracting the 9
    # taps with f32 accumulation; output is lane-dense so swish + GAP stay
    # fully lane-occupied (no 32/128 lane waste).
    w_b = jnp.broadcast_to(w_stem_ref[...][None], (bn, STEM_CH, KDIM))
    h = jax.lax.dot_general(
        w_b, patch,
        dimension_numbers=(((2,), (1,)), ((0,), (0,))),
        preferred_element_type=jnp.float32)                    # [bn, 32, pc] f32
    h = h + b_stem_ref[...]                                    # [32,1] bcast
    h = h * jax.nn.sigmoid(h)                                  # swish (f32 VPU/EUP)
    acc_ref[...] += jnp.sum(h, axis=-1)                        # GAP partial sums

    @pl.when(j == pl.num_programs(1) - 1)
    def _():
        pooled = acc_ref[...] * (1.0 / p_total)                # [bn, 32] f32
        # Batched 32 -> 1280 projection: M = bn MXU rows, bf16 in / f32 acc.
        feat = jnp.dot(pooled.astype(jnp.bfloat16), w_proj_ref[...],
                       preferred_element_type=jnp.float32) + b_proj_ref[...]
        feat = feat * jax.nn.sigmoid(feat)                     # [bn, 1280] f32
        # Fused head in bf16: every image dotted against all three per-branch
        # fc slices; the correct slice is selected (and summed) in the wrapper,
        # so the 1280-d features never hit HBM.
        out_ref[...] = jax.lax.dot_general(
            feat.astype(jnp.bfloat16), w_fc_ref[...],
            dimension_numbers=(((1,), (1,)), ((), ())),
            preferred_element_type=jnp.float32).astype(out_ref.dtype)   # [bn, 3]


def fused_features_and_head(patches, w_stem_t, b_stem, w_proj, b_proj, w_fc3,
                            *, block_n=128, max_tile_elems=1 << 16):
    """patches [N, 9, P] (bf16) -> per-image / per-branch partial logits [N, 3]."""
    n, k, p = patches.shape
    assert k == KDIM

    # Image-block size: as large as the batch allows (MXU rows), but split into
    # >= 2 blocks when possible so the "parallel" grid axis can be sharded over
    # both v7x TensorCores (costs at most one extra grid step on v5e/v6e).
    bn_cap = _round_up(n, 8)
    bn = max(8, min(_round_up(block_n, 8), bn_cap))
    if _round_up(n, bn) // bn < 2 and bn_cap >= 16:
        bn = _round_up(pl.cdiv(n, 2), 8)
    n_pad = _round_up(n, bn)
    if n_pad != n:
        patches = jnp.pad(patches, ((0, n_pad - n), (0, 0), (0, 0)))

    # P-chunking bounds the [bn, 32, pc] f32 stem intermediate (<= 8 MiB at the
    # defaults) plus the double-buffered patch block, so large images fit the
    # 32 MiB scoped budget (and v7x's 64 MiB physical) at MXU-friendly block_n.
    pc = _choose_p_chunk(p, bn, max_tile_elems)
    grid = (n_pad // bn, p // pc)

    kernel = functools.partial(_fused_kernel, float(p))
    out = pl.pallas_call(
        kernel,
        out_shape=jax.ShapeDtypeStruct((n_pad, NUM_BRANCH), jnp.float32),
        grid_spec=pltpu.PrefetchScalarGridSpec(
            num_scalar_prefetch=0,
            grid=grid,
            in_specs=[
                # Lane-dense patch block: contiguous pc-long rows per (image, tap).
                pl.BlockSpec((bn, KDIM, pc), lambda i, j: (i, 0, j)),
                # Grid-invariant weights (tiny: ~170 KiB total after transposes).
                pl.BlockSpec((STEM_CH, KDIM), lambda i, j: (0, 0)),
                pl.BlockSpec((STEM_CH, 1), lambda i, j: (0, 0)),
                pl.BlockSpec((STEM_CH, FEAT_DIM), lambda i, j: (0, 0)),
                pl.BlockSpec((1, FEAT_DIM), lambda i, j: (0, 0)),
                pl.BlockSpec((NUM_BRANCH, FEAT_DIM), lambda i, j: (0, 0)),
            ],
            out_specs=pl.BlockSpec((bn, NUM_BRANCH), lambda i, j: (i, 0)),
            scratch_shapes=[pltpu.VMEM((bn, STEM_CH), jnp.float32)],
        ),
        compiler_params=pltpu.CompilerParams(
            dimension_semantics=("parallel", "arbitrary"),
            vmem_limit_bytes=32 * 1024 * 1024,
        ),
    )(patches, w_stem_t, b_stem, w_proj, b_proj, w_fc3)
    return out[:n]                                             # [N, 3]


# ----------------------------------------------------------------------------
# Plain-JAX glue
# ----------------------------------------------------------------------------
def im2col(x):
    """x: [N, 1, H, W] NCHW -> patches [N, 9, OH*OW] (positions minor / lane-dense)."""
    patches = jax.lax.conv_general_dilated_patches(
        x, filter_shape=(KSIZE, KSIZE), window_strides=(STRIDE, STRIDE),
        padding=((PAD, PAD), (PAD, PAD)))
    n, ck, oh, ow = patches.shape                              # ck = 1*3*3 = 9
    return patches.reshape(n, ck, oh * ow)


def init_params(key):
    k1, k2, k3 = jax.random.split(key, 3)
    return {
        "w_stem": jax.random.normal(k1, (KDIM, STEM_CH), jnp.float32)
                  * jnp.sqrt(2.0 / KDIM),
        "b_stem": jnp.zeros((STEM_CH, 1), jnp.float32),
        "w_proj": jax.random.normal(k2, (STEM_CH, FEAT_DIM), jnp.float32)
                  * jnp.sqrt(2.0 / STEM_CH),
        "b_proj": jnp.zeros((1, FEAT_DIM), jnp.float32),
        # NOTE: nn.Linear stores weight as [out, in] = [1, 3840]; real PyTorch
        # weights would need a transpose at load time.
        "w_fc":   jax.random.normal(k3, (NUM_BRANCH * FEAT_DIM, 1), jnp.float32)
                  * (1.0 / jnp.sqrt(NUM_BRANCH * FEAT_DIM)),
        "b_fc":   jnp.zeros((1, 1), jnp.float32),
    }


def fusion_net_forward(x, params, *, block_n=128):
    """x: [B, 3, H, W] (NCHW, like PyTorch) -> [B] sigmoid outputs."""
    b, c, h, w = x.shape
    assert c == NUM_BRANCH
    # Shared backbone applied to each channel as a 1-channel image; row-major
    # reshape keeps the torch.cat([out1, out2, out3], dim=1) ordering.
    x_branches = x.reshape(b * NUM_BRANCH, 1, h, w)
    patches = im2col(x_branches).astype(jnp.bfloat16)          # [B*3, 9, P]

    # fc weight [3840, 1] -> per-branch slices, lane-dense [3, 1280].
    w_fc3 = params["w_fc"].reshape(NUM_BRANCH, FEAT_DIM)

    part = fused_features_and_head(
        patches,
        params["w_stem"].T.astype(jnp.bfloat16),               # [32, 9]
        params["b_stem"],                                       # [32, 1]
        params["w_proj"].astype(jnp.bfloat16),                  # [32, 1280]
        params["b_proj"],                                       # [1, 1280]
        w_fc3.astype(jnp.bfloat16),                             # [3, 1280]
        block_n=block_n)                                        # [B*3, 3]

    # Pick each image's own branch slice and sum over the 3 branches
    # (== concat(feat1, feat2, feat3) @ w_fc), then bias + sigmoid.
    part = part.reshape(b, NUM_BRANCH, NUM_BRANCH)
    logits = jnp.trace(part, axis1=1, axis2=2) + params["b_fc"][0, 0]
    # Dropout(p=0.2) is identity in eval mode.
    return jax.nn.sigmoid(logits)                               # [B]


def reference_forward(x, params):
    """Pure-JAX f32 reference of the same simplified backbone + fusion head."""
    b, c, h, w = x.shape
    xb = x.reshape(b * NUM_BRANCH, 1, h, w)
    patches = im2col(xb)                                        # [N, 9, P] f32
    hh = jnp.einsum("nkp,kc->ncp", patches, params["w_stem"]) + params["b_stem"]
    hh = hh * jax.nn.sigmoid(hh)
    pooled = hh.mean(axis=-1)                                   # [N, 32]
    feat = pooled @ params["w_proj"] + params["b_proj"]
    feat = feat * jax.nn.sigmoid(feat)                          # [N, 1280]
    flat = feat.reshape(b, NUM_BRANCH * FEAT_DIM)
    logits = flat @ params["w_fc"] + params["b_fc"]
    return jax.nn.sigmoid(logits[:, 0])


if __name__ == "__main__":
    key = jax.random.PRNGKey(0)
    kx, kp = jax.random.split(key)
    x = jax.random.normal(kx, (2, 3, 16, 16), jnp.float32)      # [B, 3, H, W]
    params = init_params(kp)

    out = fusion_net_forward(x, params)
    jax.block_until_ready(out)

    assert out.shape == (2,)
    assert bool(jnp.all((out >= 0.0) & (out <= 1.0)))
    ref = reference_forward(x, params)
    assert bool(jnp.allclose(out, ref, atol=5e-2)), (out, ref)
    print("KERNEL_OK")
</pallas_src>

<mosaic_0001>
module attributes {stable_mosaic.version = 11 : i64} {
  func.func @_fused_kernel(%arg0: i32, %arg1: i32, %arg2: memref<8x9x64xbf16, #tpu.memory_space<vmem>>, %arg3: memref<32x9xbf16, #tpu.memory_space<vmem>>, %arg4: memref<32x1xf32, #tpu.memory_space<vmem>>, %arg5: memref<32x1280xbf16, #tpu.memory_space<vmem>>, %arg6: memref<1x1280xf32, #tpu.memory_space<vmem>>, %arg7: memref<3x1280xbf16, #tpu.memory_space<vmem>>, %arg8: memref<8x3xf32, #tpu.memory_space<vmem>>, %arg9: memref<8x32xf32, #tpu.memory_space<vmem>>) attributes {dimension_semantics = [#tpu.dimension_semantics<parallel>, #tpu.dimension_semantics<arbitrary>], iteration_bounds = array<i64: 1, 1>, scalar_prefetch = 0 : i64, scratch_operands = 1 : i64, tpu.core_type = #tpu.core_type<tc>, window_params = [{transform_indices = @transform_0, window_bounds = array<i64: 8, 9, 64>}, {pipeline_mode = #tpu.pipeline_mode<synchronous>, transform_indices = @transform_1, window_bounds = array<i64: 32, 9>}, {pipeline_mode = #tpu.pipeline_mode<synchronous>, transform_indices = @transform_2, window_bounds = array<i64: 32, 1>}, {pipeline_mode = #tpu.pipeline_mode<synchronous>, transform_indices = @transform_3, window_bounds = array<i64: 32, 1280>}, {pipeline_mode = #tpu.pipeline_mode<synchronous>, transform_indices = @transform_4, window_bounds = array<i64: 1, 1280>}, {pipeline_mode = #tpu.pipeline_mode<synchronous>, transform_indices = @transform_5, window_bounds = array<i64: 3, 1280>}, {transform_indices = @transform_6, window_bounds = array<i64: 8, 3>}]} {
    %c0_i32 = arith.constant 0 : i32
    %0 = arith.cmpi eq, %arg1, %c0_i32 : i32
    %1 = arith.extui %0 : i1 to i32
    %c0_i32_0 = arith.constant 0 : i32
    %2 = arith.cmpi ne, %1, %c0_i32_0 : i32
    scf.if %2 {
      %cst_15 = arith.constant 0.000000e+00 : f32
      %26 = vector.broadcast %cst_15 : f32 to vector<8x32xf32>
      %c0_16 = arith.constant 0 : index
      %c0_17 = arith.constant 0 : index
      %27 = vector.load %arg9[%c0_16, %c0_17] : memref<8x32xf32, #tpu.memory_space<vmem>>, vector<8x32xf32>
      tpu.vector_store %arg9[%c0_16, %c0_17], %26 {strides = array<i32>} : memref<8x32xf32, #tpu.memory_space<vmem>>, vector<8x32xf32>,
    } else {
    }
    %c0 = arith.constant 0 : index
    %c0_1 = arith.constant 0 : index
    %c0_2 = arith.constant 0 : index
    %3 = vector.load %arg2[%c0, %c0_1, %c0_2] : memref<8x9x64xbf16, #tpu.memory_space<vmem>>, vector<8x9x64xbf16>
    %c0_3 = arith.constant 0 : index
    %c0_4 = arith.constant 0 : index
    %4 = vector.load %arg3[%c0_3, %c0_4] : memref<32x9xbf16, #tpu.memory_space<vmem>>, vector<32x9xbf16>
    %5 = vector.shape_cast %4 : vector<32x9xbf16> to vector<1x32x9xbf16>
    %6 = vector.shape_cast %5 : vector<1x32x9xbf16> to vector<1x32x9xbf16>
    %7 = vector.broadcast %6 : vector<1x32x9xbf16> to vector<8x32x9xbf16>
    %cst = arith.constant dense<0.000000e+00> : vector<8x32x64xf32>
    %8 = tpu.matmul %7, %3, %cst {dimension_numbers = #tpu.dot_dimension_numbers<[2], [1], [1], [2], [0, 0, 0, 1, 1, 2], [0], [0]>} : vector<8x32x9xbf16>, vector<8x9x64xbf16>, vector<8x32x64xf32> -> vector<8x32x64xf32>
    %c0_5 = arith.constant 0 : index
    %c0_6 = arith.constant 0 : index
    %9 = vector.load %arg4[%c0_5, %c0_6] : memref<32x1xf32, #tpu.memory_space<vmem>>, vector<32x1xf32>
    %10 = vector.shape_cast %9 : vector<32x1xf32> to vector<1x32x1xf32>
    %11 = vector.broadcast %10 : vector<1x32x1xf32> to vector<8x32x64xf32>
    %12 = arith.addf %8, %11 : vector<8x32x64xf32>
    %13 = arith.negf %12 : vector<8x32x64xf32>
    %14 = math.exp %13 : vector<8x32x64xf32>
    %cst_7 = arith.constant 1.000000e+00 : f32
    %15 = vector.broadcast %cst_7 : f32 to vector<8x32x64xf32>
    %16 = arith.addf %15, %14 : vector<8x32x64xf32>
    %17 = arith.divf %15, %16 : vector<8x32x64xf32>
    %18 = arith.mulf %12, %17 : vector<8x32x64xf32>
    %c0_8 = arith.constant 0 : index
    %c0_9 = arith.constant 0 : index
    %19 = vector.load %arg9[%c0_8, %c0_9] : memref<8x32xf32, #tpu.memory_space<vmem>>, vector<8x32xf32>
    %cst_10 = arith.constant dense<0.000000e+00> : vector<8x32xf32>
    %20 = vector.multi_reduction <add>, %18, %cst_10 [2] : vector<8x32x64xf32> to vector<8x32xf32>
    %21 = arith.addf %19, %20 : vector<8x32xf32>
    %c0_11 = arith.constant 0 : index
    %c0_12 = arith.constant 0 : index
    %22 = vector.load %arg9[%c0_11, %c0_12] : memref<8x32xf32, #tpu.memory_space<vmem>>, vector<8x32xf32>
    tpu.vector_store %arg9[%c0_11, %c0_12], %21 {strides = array<i32>} : memref<8x32xf32, #tpu.memory_space<vmem>>, vector<8x32xf32>,
    %c0_i32_13 = arith.constant 0 : i32
    %23 = arith.cmpi eq, %arg1, %c0_i32_13 : i32
    %24 = arith.extui %23 : i1 to i32
    %c0_i32_14 = arith.constant 0 : i32
    %25 = arith.cmpi ne, %24, %c0_i32_14 : i32
    scf.if %25 {
      %c0_15 = arith.constant 0 : index
      %c0_16 = arith.constant 0 : index
      %26 = vector.load %arg9[%c0_15, %c0_16] : memref<8x32xf32, #tpu.memory_space<vmem>>, vector<8x32xf32>
      %cst_17 = arith.constant 1.562500e-02 : f32
      %27 = vector.broadcast %cst_17 : f32 to vector<8x32xf32>
      %28 = arith.mulf %26, %27 : vector<8x32xf32>
      %29 = arith.truncf %28 : vector<8x32xf32> to vector<8x32xbf16>
      %c0_18 = arith.constant 0 : index
      %c0_19 = arith.constant 0 : index
      %30 = vector.load %arg5[%c0_18, %c0_19] : memref<32x1280xbf16, #tpu.memory_space<vmem>>, vector<32x1280xbf16>
      %cst_20 = arith.constant dense<0.000000e+00> : vector<8x1280xf32>
      %31 = tpu.matmul %29, %30, %cst_20 {dimension_numbers = #tpu.dot_dimension_numbers<[1], [0], [0], [1], [0, 0, 1, 1], [], []>} : vector<8x32xbf16>, vector<32x1280xbf16>, vector<8x1280xf32> -> vector<8x1280xf32>
      %c0_21 = arith.constant 0 : index
      %c0_22 = arith.constant 0 : index
      %32 = vector.load %arg6[%c0_21, %c0_22] : memref<1x1280xf32, #tpu.memory_space<vmem>>, vector<1x1280xf32>
      %33 = vector.broadcast %32 : vector<1x1280xf32> to vector<8x1280xf32>
      %34 = arith.addf %31, %33 : vector<8x1280xf32>
      %35 = arith.negf %34 : vector<8x1280xf32>
      %36 = math.exp %35 : vector<8x1280xf32>
      %cst_23 = arith.constant 1.000000e+00 : f32
      %37 = vector.broadcast %cst_23 : f32 to vector<8x1280xf32>
      %38 = arith.addf %37, %36 : vector<8x1280xf32>
      %39 = arith.divf %37, %38 : vector<8x1280xf32>
      %40 = arith.mulf %34, %39 : vector<8x1280xf32>
      %41 = arith.truncf %40 : vector<8x1280xf32> to vector<8x1280xbf16>
      %c0_24 = arith.constant 0 : index
      %c0_25 = arith.constant 0 : index
      %42 = vector.load %arg7[%c0_24, %c0_25] : memref<3x1280xbf16, #tpu.memory_space<vmem>>, vector<3x1280xbf16>
      %cst_26 = arith.constant dense<0.000000e+00> : vector<8x3xf32>
      %43 = tpu.matmul %41, %42, %cst_26 {dimension_numbers = #tpu.dot_dimension_numbers<[1], [1], [0], [0], [0, 0, 1, 0], [], []>} : vector<8x1280xbf16>, vector<3x1280xbf16>, vector<8x3xf32> -> vector<8x3xf32>
      %c0_27 = arith.constant 0 : index
      %c0_28 = arith.constant 0 : index
      %44 = vector.load %arg8[%c0_27, %c0_28] : memref<8x3xf32, #tpu.memory_space<vmem>>, vector<8x3xf32>
      tpu.vector_store %arg8[%c0_27, %c0_28], %43 {strides = array<i32>} : memref<8x3xf32, #tpu.memory_space<vmem>>, vector<8x3xf32>,
    } else {
    }
    return
  }
  func.func @transform_0(%arg0: i32, %arg1: i32) -> (i32, i32, i32) {
    %c0_i32 = arith.constant 0 : i32
    %c0_i32_0 = arith.constant 0 : i32
    return %arg0, %c0_i32, %arg1 : i32, i32, i32
  }
  func.func @transform_1(%arg0: i32, %arg1: i32) -> (i32, i32) {
    %c0_i32 = arith.constant 0 : i32
    %c0_i32_0 = arith.constant 0 : i32
    %c0_i32_1 = arith.constant 0 : i32
    return %c0_i32, %c0_i32_0 : i32, i32
  }
  func.func @transform_2(%arg0: i32, %arg1: i32) -> (i32, i32) {
    %c0_i32 = arith.constant 0 : i32
    %c0_i32_0 = arith.constant 0 : i32
    %c0_i32_1 = arith.constant 0 : i32
    return %c0_i32, %c0_i32_0 : i32, i32
  }
  func.func @transform_3(%arg0: i32, %arg1: i32) -> (i32, i32) {
    %c0_i32 = arith.constant 0 : i32
    %c0_i32_0 = arith.constant 0 : i32
    %c0_i32_1 = arith.constant 0 : i32
    return %c0_i32, %c0_i32_0 : i32, i32
  }
  func.func @transform_4(%arg0: i32, %arg1: i32) -> (i32, i32) {
    %c0_i32 = arith.constant 0 : i32
    %c0_i32_0 = arith.constant 0 : i32
    %c0_i32_1 = arith.constant 0 : i32
    return %c0_i32, %c0_i32_0 : i32, i32
  }
  func.func @transform_5(%arg0: i32, %arg1: i32) -> (i32, i32) {
    %c0_i32 = arith.constant 0 : i32
    %c0_i32_0 = arith.constant 0 : i32
    %c0_i32_1 = arith.constant 0 : i32
    return %c0_i32, %c0_i32_0 : i32, i32
  }
  func.func @transform_6(%arg0: i32, %arg1: i32) -> (i32, i32) {
    %c0_i32 = arith.constant 0 : i32
    %c0_i32_0 = arith.constant 0 : i32
    return %arg0, %c0_i32 : i32, i32
  }
}

</mosaic_0001>

<llo_original>
// kernel: tpu_custom_call.1
$region0: #{tpu_custom_call.1}
  #allocation0 [shape = 'u32[]', space=smem, size = 0x4, offset = 0x4, fixed_abs, tag = 'smem constant byte address 0x4 - core index']
  #allocation1 [shape = 'u32[144,128]{1,0:T(1,128)}', space=vmem, size = 0x12000, scoped, tag = 'internal scratch']
  #allocation2 [shape = 'f32[8,32]{1,0:T(8,128)}', space=vmem, size = 0x1000, scoped, tag = 'scratch operand']
  %s0 = inlined_call_operand.vmem [shape: bf16[8,9,64], index: 0, kind: input, shape index: {}]
  %s1 = inlined_call_operand.vmem [shape: bf16[32,9], index: 1, kind: input, shape index: {}]
  %s2 = inlined_call_operand.vmem [shape: f32[32,1], index: 2, kind: input, shape index: {}]
  %s3 = inlined_call_operand.vmem [shape: bf16[32,1280], index: 3, kind: input, shape index: {}]
  %s4 = inlined_call_operand.vmem [shape: f32[1,1280], index: 4, kind: input, shape index: {}]
  %s5 = inlined_call_operand.hbm [shape: bf16[3,1280], index: 5, kind: input, shape index: {}]
  %s6 = inlined_call_operand.vmem [shape: f32[8,3], index: 6, kind: output, shape index: {}]
  %s7 = sld [smem:[#allocation0]]
  $region46: #{tpu_custom_call.1} parent=0
    _
  %s9 = ssub.s32 1, %s7
  %s10 = scalar_select 0, %s9, %s7
  $region1: #{tpu_custom_call.1} parent=0
    #allocation3 [shape = 'u8[10240]{0}', space=vmem, size = 0x2800, scoped, tag = 'input window, operand 5, single buffered']
    #allocation4 [shape = 's32[1]{0}', space=sflag, size = 0x4, scoped, tag = 'scoped memory for tpu_custom_call.1']
    %11 = vsyncpa [#allocation4], 0
    // Predicated region
    $region2: #{tpu_custom_call.1} parent=1 // pred_check
      _
    $region3: #{tpu_custom_call.1} parent=1 // pred_check_branch
      %13 = sbr.rel (0) target = $region5
    $region4: #{tpu_custom_call.1} parent=1 // pred_region
      _
    $region5: #{tpu_custom_call.1} parent=1 // pred_fallthru
      _
    // Predicated region
    $region6: #{tpu_custom_call.1} parent=1 // pred_check
      _
    $region7: #{tpu_custom_call.1} parent=1 // pred_check_branch
      %15 = sbr.rel (0) target = $region9
    $region8: #{tpu_custom_call.1} parent=1 // pred_region
      _
    $region9: #{tpu_custom_call.1} parent=1 // pred_fallthru
      _
    // Predicated region
    $region10: #{tpu_custom_call.1} parent=1 // pred_check
      _
    $region11: #{tpu_custom_call.1} parent=1 // pred_check_branch
      %17 = sbr.rel (0) target = $region13
    $region12: #{tpu_custom_call.1} parent=1 // pred_region
      _
    $region13: #{tpu_custom_call.1} parent=1 // pred_fallthru
      _
    // Predicated region
    $region14: #{tpu_custom_call.1} parent=1 // pred_check
      _
    $region15: #{tpu_custom_call.1} parent=1 // pred_check_branch
      %19 = sbr.rel (0) target = $region17
    $region16: #{tpu_custom_call.1} parent=1 // pred_region
      _
    $region17: #{tpu_custom_call.1} parent=1 // pred_fallthru
      _
    // Predicated region
    $region18: #{tpu_custom_call.1} parent=1 // pred_check
      _
    $region19: #{tpu_custom_call.1} parent=1 // pred_check_branch
      %21 = sbr.rel (0) target = $region21
    $region20: #{tpu_custom_call.1} parent=1 // pred_region
      _
    $region21: #{tpu_custom_call.1} parent=1 // pred_fallthru
      _
    // Predicated region
    $region22: #{tpu_custom_call.1} parent=1 // pred_check
      _
    $region23: #{tpu_custom_call.1} parent=1 // pred_check_branch
      %23 = sbr.rel (0) target = $region25
    $region24: #{tpu_custom_call.1} parent=1 // pred_region
      %s25 = ssub.s32 320, 320
      %26 = vsyncadd [#allocation4], %s25
      %s28 = sshll.u32 [#allocation3], 4
      %s29 = int_to_ptr.vmem [resolvable:$true] %s28
      %31 = dma.hbm_to_vmem [thread:$0]  %s5, 320, %s29, [#allocation4]
    $region25: #{tpu_custom_call.1} parent=1 // pred_fallthru
      _
    // Predicated region
    $region26: #{tpu_custom_call.1} parent=1 // pred_check
      _
    $region27: #{tpu_custom_call.1} parent=1 // pred_check_branch
      %33 = sbr.rel (0) target = $region29
    $region28: #{tpu_custom_call.1} parent=1 // pred_region
      %34 = dma.done [#allocation4], 320
    $region29: #{tpu_custom_call.1} parent=1 // pred_fallthru
      _
    %p36 = scmp.eq.s32.totalorder 0, 0
    // Predicated region
    $region30: #{tpu_custom_call.1} parent=1 // pred_check
      %p37 = pneg %p36
    $region31: #{tpu_custom_call.1} parent=1 // pred_check_branch
      %39 = sbr.rel (%p37) target = $region33
    $region32: #{tpu_custom_call.1} parent=1 // pred_region
      %vm40 = vcmask 261120
      %41 = vst.msk [vmem:[#allocation2] sm:$0xff] %vm40, 0.0
    $region33: #{tpu_custom_call.1} parent=1 // pred_fallthru
      _
    %v42 = vld [vmem:[%s0] sm:$0xf]
    %v43 = vld [vmem:[%s0 + $0x4] sm:$0x1]
    %v44 = vld [vmem:[%s0 + $0x8] sm:$0xf]
    %v45 = vld [vmem:[%s0 + $0xc] sm:$0x1]
    %v46 = vld [vmem:[%s0 + $0x10] sm:$0xf]
    %v47 = vld [vmem:[%s0 + $0x14] sm:$0x1]
    %v48 = vld [vmem:[%s0 + $0x18] sm:$0xf]
    %v49 = vld [vmem:[%s0 + $0x1c] sm:$0x1]
    %v50 = vld [vmem:[%s0 + $0x20] sm:$0xf]
    %v51 = vld [vmem:[%s0 + $0x24] sm:$0x1]
    %v52 = vld [vmem:[%s0 + $0x28] sm:$0xf]
    %v53 = vld [vmem:[%s0 + $0x2c] sm:$0x1]
    %v54 = vld [vmem:[%s0 + $0x30] sm:$0xf]
    %v55 = vld [vmem:[%s0 + $0x34] sm:$0x1]
    %v56 = vld [vmem:[%s0 + $0x38] sm:$0xf]
    %v57 = vld [vmem:[%s0 + $0x3c] sm:$0x1]
    %v58 = vld [vmem:[%s1] sm:$0xf]
    %v59 = vld [vmem:[%s1 + $0x4] sm:$0xf]
    %v60 = vld [vmem:[%s1 + $0x8] sm:$0xf]
    %v61 = vld [vmem:[%s1 + $0xc] sm:$0xf]
    %v62 = vld [vmem:[%s2] sm:$0xff]
    %v63 = vld [vmem:[%s2 + $0x8] sm:$0xff]
    %v64 = vld [vmem:[%s2 + $0x10] sm:$0xff]
    %v65 = vld [vmem:[%s2 + $0x18] sm:$0xff]
    %67 = vset.pattern.permute.xlu0 0
    %68 = vperm.xlu0 %67, %v62
    %v69 = vpop.permute.xlu0 %68
    %72 = vset.pattern.permute.xlu0 0
    %73 = vperm.xlu0 %72, %v63
    %v74 = vpop.permute.xlu0 %73
    %77 = vset.pattern.permute.xlu0 0
    %78 = vperm.xlu0 %77, %v64
    %v79 = vpop.permute.xlu0 %78
    %82 = vset.pattern.permute.xlu0 0
    %83 = vperm.xlu0 %82, %v65
    %v84 = vpop.permute.xlu0 %83
    %v90 = vunpack.c.l.b16 %v58
    %v91 = vunpack.c.l.b16 %v59
    %v92 = vunpack.c.l.b16 %v60
    %v93 = vunpack.c.l.b16 %v61
    %v94 = vpack.c.b16 %v91, %v90
    %v95 = vpack.c.b16 %v93, %v92
    %v98 = vunpack.c.l.b16 %v42
    %v99 = vunpack.c.l.b16 %v43
    %v100 = vpack.c.b16 %v99, %v98
    %vm101 = vcmask 72704
    %v103 = vsel %vm101, %v94, 0
    %v106 = vsel %vm101, %v95, 0
    %vm108 = vcmask 1043456
    %vm109 = vcmask 1044480
    %v110 = vsel %vm108, 4294967295, 65535
    %v111 = vsel %vm109, %v110, 0
    %v113 = vand.u32 %v100, %v111
    %115 = vmatprep.subr.bf16.mxu0 0
    %116 = vmatpush1.bf16.msra.mxu0 %v113
    %117 = vmatprep.subr.bf16.mxu0 0
    %118 = vmatpush1.bf16.msra.mxu0 0
    %119 = vmatprep.subr.bf16.mxu0 0
    %120 = vmatpush1.bf16.msra.mxu0 0
    %121 = vmatprep.subr.bf16.mxu0 0
    %122 = vmatpush1.bf16.msra.mxu0 0
    %123 = vmatprep.subr.bf16.mxu0 0
    %124 = vmatpush1.bf16.msra.mxu0 0
    %125 = vmatprep.subr.bf16.mxu0 0
    %126 = vmatpush1.bf16.msra.mxu0 0
    %127 = vmatprep.subr.bf16.mxu0 0
    %128 = vmatpush1.bf16.msra.mxu0 0
    %129 = vmatprep.subr.bf16.mxu0 0
    %130 = vmatpush1.bf16.msra.mxu0 0
    %131 = vmatprep.subr.bf16.mxu0 0
    %132 = vmatpush1.bf16.msra.mxu0 0
    %133 = vmatprep.subr.bf16.mxu0 0
    %134 = vmatpush1.bf16.msra.mxu0 0
    %135 = vmatprep.subr.bf16.mxu0 0
    %136 = vmatpush1.bf16.msra.mxu0 0
    %137 = vmatprep.subr.bf16.mxu0 0
    %138 = vmatpush1.bf16.msra.mxu0 0
    %139 = vmatprep.subr.bf16.mxu0 0
    %140 = vmatpush1.bf16.msra.mxu0 0
    %141 = vmatprep.subr.bf16.mxu0 0
    %142 = vmatpush1.bf16.msra.mxu0 0
    %143 = vmatprep.subr.bf16.mxu0 0
    %144 = vmatpush1.bf16.msra.mxu0 0
    %145 = vmatprep.subr.bf16.mxu0 0
    %146 = vmatpush1.bf16.msra.mxu0 0
    %147 = vmatprep.mubr.bf16.mxu0 0
    %148 = vmatmul.mubr.bf16.gmra.mrb[0].mxu0 %v103
    %v149 = vpop.f32.mrb[0].mxu0
    %v150 = vadd.f32 %v69, %v149
    %v151 = vpop.f32.mrb[0].mxu0
    %v152 = vpop.f32.mrb[0].mxu0
    %v153 = vadd.f32 %v74, %v152
    %v154 = vpop.f32.mrb[0].mxu0
    %155 = vmatprep.mubr.bf16.mxu0 0
    %156 = vmatmul.mubr.bf16.gmra.mrb[0].mxu0 %v106
    %v157 = vpop.f32.mrb[0].mxu0
    %v158 = vadd.f32 %v79, %v157
    %v159 = vpop.f32.mrb[0].mxu0
    %v160 = vpop.f32.mrb[0].mxu0
    %v161 = vadd.f32 %v84, %v160
    %v162 = vpop.f32.mrb[0].mxu0
    %163 = vdwg.mxu0
    %v166 = vunpack.c.l.b16 %v44
    %v167 = vunpack.c.l.b16 %v45
    %v168 = vpack.c.b16 %v167, %v166
    %v170 = vand.u32 %v168, %v111
    %172 = vmatprep.subr.bf16.mxu0 0
    %173 = vmatpush1.bf16.msra.mxu0 %v170
    %174 = vmatprep.subr.bf16.mxu0 0
    %175 = vmatpush1.bf16.msra.mxu0 0
    %176 = vmatprep.subr.bf16.mxu0 0
    %177 = vmatpush1.bf16.msra.mxu0 0
    %178 = vmatprep.subr.bf16.mxu0 0
    %179 = vmatpush1.bf16.msra.mxu0 0
    %180 = vmatprep.subr.bf16.mxu0 0
    %181 = vmatpush1.bf16.msra.mxu0 0
    %182 = vmatprep.subr.bf16.mxu0 0
    %183 = vmatpush1.bf16.msra.mxu0 0
    %184 = vmatprep.subr.bf16.mxu0 0
    %185 = vmatpush1.bf16.msra.mxu0 0
    %186 = vmatprep.subr.bf16.mxu0 0
    %187 = vmatpush1.bf16.msra.mxu0 0
    %188 = vmatprep.subr.bf16.mxu0 0
    %189 = vmatpush1.bf16.msra.mxu0 0
    %190 = vmatprep.subr.bf16.mxu0 0
    %191 = vmatpush1.bf16.msra.mxu0 0
    %192 = vmatprep.subr.bf16.mxu0 0
    %193 = vmatpush1.bf16.msra.mxu0 0
    %194 = vmatprep.subr.bf16.mxu0 0
    %195 = vmatpush1.bf16.msra.mxu0 0
    %196 = vmatprep.subr.bf16.mxu0 0
    %197 = vmatpush1.bf16.msra.mxu0 0
    %198 = vmatprep.subr.bf16.mxu0 0
    %199 = vmatpush1.bf16.msra.mxu0 0
    %200 = vmatprep.subr.bf16.mxu0 0
    %201 = vmatpush1.bf16.msra.mxu0 0
    %202 = vmatprep.subr.bf16.mxu0 0
    %203 = vmatpush1.bf16.msra.mxu0 0
    %204 = vmatprep.mubr.bf16.mxu0 0
    %205 = vmatmul.mubr.bf16.gmra.mrb[0].mxu0 %v103
    %v206 = vpop.f32.mrb[0].mxu0
    %v207 = vadd.f32 %v69, %v206
    %v208 = vpop.f32.mrb[0].mxu0
    %v209 = vpop.f32.mrb[0].mxu0
    %v210 = vadd.f32 %v74, %v209
    %v211 = vpop.f32.mrb[0].mxu0
    %212 = vmatprep.mubr.bf16.mxu0 0
    %213 = vmatmul.mubr.bf16.gmra.mrb[0].mxu0 %v106
    %v214 = vpop.f32.mrb[0].mxu0
    %v215 = vadd.f32 %v79, %v214
    %v216 = vpop.f32.mrb[0].mxu0
    %v217 = vpop.f32.mrb[0].mxu0
    %v218 = vadd.f32 %v84, %v217
    %v219 = vpop.f32.mrb[0].mxu0
    %220 = vdwg.mxu0
    %v223 = vunpack.c.l.b16 %v46
    %v224 = vunpack.c.l.b16 %v47
    %v225 = vpack.c.b16 %v224, %v223
    %v227 = vand.u32 %v225, %v111
    %229 = vmatprep.subr.bf16.mxu0 0
    %230 = vmatpush1.bf16.msra.mxu0 %v227
    %231 = vmatprep.subr.bf16.mxu0 0
    %232 = vmatpush1.bf16.msra.mxu0 0
    %233 = vmatprep.subr.bf16.mxu0 0
    %234 = vmatpush1.bf16.msra.mxu0 0
    %235 = vmatprep.subr.bf16.mxu0 0
    %236 = vmatpush1.bf16.msra.mxu0 0
    %237 = vmatprep.subr.bf16.mxu0 0
    %238 = vmatpush1.bf16.msra.mxu0 0
    %239 = vmatprep.subr.bf16.mxu0 0
    %240 = vmatpush1.bf16.msra.mxu0 0
    %241 = vmatprep.subr.bf16.mxu0 0
    %242 = vmatpush1.bf16.msra.mxu0 0
    %243 = vmatprep.subr.bf16.mxu0 0
    %244 = vmatpush1.bf16.msra.mxu0 0
    %245 = vmatprep.subr.bf16.mxu0 0
    %246 = vmatpush1.bf16.msra.mxu0 0
    %247 = vmatprep.subr.bf16.mxu0 0
    %248 = vmatpush1.bf16.msra.mxu0 0
    %249 = vmatprep.subr.bf16.mxu0 0
    %250 = vmatpush1.bf16.msra.mxu0 0
    %251 = vmatprep.subr.bf16.mxu0 0
    %252 = vmatpush1.bf16.msra.mxu0 0
    %253 = vmatprep.subr.bf16.mxu0 0
    %254 = vmatpush1.bf16.msra.mxu0 0
    %255 = vmatprep.subr.bf16.mxu0 0
    %256 = vmatpush1.bf16.msra.mxu0 0
    %257 = vmatprep.subr.bf16.mxu0 0
    %258 = vmatpush1.bf16.msra.mxu0 0
    %259 = vmatprep.subr.bf16.mxu0 0
    %260 = vmatpush1.bf16.msra.mxu0 0
    %261 = vmatprep.mubr.bf16.mxu0 0
    %262 = vmatmul.mubr.bf16.gmra.mrb[0].mxu0 %v103
    %v263 = vpop.f32.mrb[0].mxu0
    %v264 = vadd.f32 %v69, %v263
    %v265 = vpop.f32.mrb[0].mxu0
    %v266 = vpop.f32.mrb[0].mxu0
    %v267 = vadd.f32 %v74, %v266
    %v268 = vpop.f32.mrb[0].mxu0
    %269 = vmatprep.mubr.bf16.mxu0 0
    %270 = vmatmul.mubr.bf16.gmra.mrb[0].mxu0 %v106
    %v271 = vpop.f32.mrb[0].mxu0
    %v272 = vadd.f32 %v79, %v271
    %v273 = vpop.f32.mrb[0].mxu0
    %v274 = vpop.f32.mrb[0].mxu0
    %v275 = vadd.f32 %v84, %v274
    %v276 = vpop.f32.mrb[0].mxu0
    %277 = vdwg.mxu0
    %v280 = vunpack.c.l.b16 %v48
    %v281 = vunpack.c.l.b16 %v49
    %v282 = vpack.c.b16 %v281, %v280
    %v284 = vand.u32 %v282, %v111
    %286 = vmatprep.subr.bf16.mxu0 0
    %287 = vmatpush1.bf16.msra.mxu0 %v284
    %288 = vmatprep.subr.bf16.mxu0 0
    %289 = vmatpush1.bf16.msra.mxu0 0
    %290 = vmatprep.subr.bf16.mxu0 0
    %291 = vmatpush1.bf16.msra.mxu0 0
    %292 = vmatprep.subr.bf16.mxu0 0
    %293 = vmatpush1.bf16.msra.mxu0 0
    %294 = vmatprep.subr.bf16.mxu0 0
    %295 = vmatpush1.bf16.msra.mxu0 0
    %296 = vmatprep.subr.bf16.mxu0 0
    %297 = vmatpush1.bf16.msra.mxu0 0
    %298 = vmatprep.subr.bf16.mxu0 0
    %299 = vmatpush1.bf16.msra.mxu0 0
    %300 = vmatprep.subr.bf16.mxu0 0
    %301 = vmatpush1.bf16.msra.mxu0 0
    %302 = vmatprep.subr.bf16.mxu0 0
    %303 = vmatpush1.bf16.msra.mxu0 0
    %304 = vmatprep.subr.bf16.mxu0 0
    %305 = vmatpush1.bf16.msra.mxu0 0
    %306 = vmatprep.subr.bf16.mxu0 0
    %307 = vmatpush1.bf16.msra.mxu0 0
    %308 = vmatprep.subr.bf16.mxu0 0
    %309 = vmatpush1.bf16.msra.mxu0 0
    %310 = vmatprep.subr.bf16.mxu0 0
    %311 = vmatpush1.bf16.msra.mxu0 0
    %312 = vmatprep.subr.bf16.mxu0 0
    %313 = vmatpush1.bf16.msra.mxu0 0
    %314 = vmatprep.subr.bf16.mxu0 0
    %315 = vmatpush1.bf16.msra.mxu0 0
    %316 = vmatprep.subr.bf16.mxu0 0
    %317 = vmatpush1.bf16.msra.mxu0 0
    %318 = vmatprep.mubr.bf16.mxu0 0
    %319 = vmatmul.mubr.bf16.gmra.mrb[0].mxu0 %v103
    %v320 = vpop.f32.mrb[0].mxu0
    %v321 = vadd.f32 %v69, %v320
    %v322 = vpop.f32.mrb[0].mxu0
    %v323 = vpop.f32.mrb[0].mxu0
    %v324 = vadd.f32 %v74, %v323
    %v325 = vpop.f32.mrb[0].mxu0
    %326 = vmatprep.mubr.bf16.mxu0 0
    %327 = vmatmul.mubr.bf16.gmra.mrb[0].mxu0 %v106
    %v328 = vpop.f32.mrb[0].mxu0
    %v329 = vadd.f32 %v79, %v328
    %v330 = vpop.f32.mrb[0].mxu0
    %v331 = vpop.f32.mrb[0].mxu0
    %v332 = vadd.f32 %v84, %v331
    %v333 = vpop.f32.mrb[0].mxu0
    %334 = vdwg.mxu0
    %v337 = vunpack.c.l.b16 %v50
    %v338 = vunpack.c.l.b16 %v51
    %v339 = vpack.c.b16 %v338, %v337
    %v341 = vand.u32 %v339, %v111
    %343 = vmatprep.subr.bf16.mxu0 0
    %344 = vmatpush1.bf16.msra.mxu0 %v341
    %345 = vmatprep.subr.bf16.mxu0 0
    %346 = vmatpush1.bf16.msra.mxu0 0
    %347 = vmatprep.subr.bf16.mxu0 0
    %348 = vmatpush1.bf16.msra.mxu0 0
    %349 = vmatprep.subr.bf16.mxu0 0
    %350 = vmatpush1.bf16.msra.mxu0 0
    %351 = vmatprep.subr.bf16.mxu0 0
    %352 = vmatpush1.bf16.msra.mxu0 0
    %353 = vmatprep.subr.bf16.mxu0 0
    %354 = vmatpush1.bf16.msra.mxu0 0
    %355 = vmatprep.subr.bf16.mxu0 0
    %356 = vmatpush1.bf16.msra.mxu0 0
    %357 = vmatprep.subr.bf16.mxu0 0
    %358 = vmatpush1.bf16.msra.mxu0 0
    %359 = vmatprep.subr.bf16.mxu0 0
    %360 = vmatpush1.bf16.msra.mxu0 0
    %361 = vmatprep.subr.bf16.mxu0 0
    %362 = vmatpush1.bf16.msra.mxu0 0
    %363 = vmatprep.subr.bf16.mxu0 0
    %364 = vmatpush1.bf16.msra.mxu0 0
    %365 = vmatprep.subr.bf16.mxu0 0
    %366 = vmatpush1.bf16.msra.mxu0 0
    %367 = vmatprep.subr.bf16.mxu0 0
    %368 = vmatpush1.bf16.msra.mxu0 0
    %369 = vmatprep.subr.bf16.mxu0 0
    %370 = vmatpush1.bf16.msra.mxu0 0
    %371 = vmatprep.subr.bf16.mxu0 0
    %372 = vmatpush1.bf16.msra.mxu0 0
    %373 = vmatprep.subr.bf16.mxu0 0
    %374 = vmatpush1.bf16.msra.mxu0 0
    %375 = vmatprep.mubr.bf16.mxu0 0
    %376 = vmatmul.mubr.bf16.gmra.mrb[0].mxu0 %v103
    %v377 = vpop.f32.mrb[0].mxu0
    %v378 = vadd.f32 %v69, %v377
    %v379 = vpop.f32.mrb[0].mxu0
    %v380 = vpop.f32.mrb[0].mxu0
    %v381 = vadd.f32 %v74, %v380
    %v382 = vpop.f32.mrb[0].mxu0
    %383 = vmatprep.mubr.bf16.mxu0 0
    %384 = vmatmul.mubr.bf16.gmra.mrb[0].mxu0 %v106
    %v385 = vpop.f32.mrb[0].mxu0
    %v386 = vadd.f32 %v79, %v385
    %v387 = vpop.f32.mrb[0].mxu0
    %v388 = vpop.f32.mrb[0].mxu0
    %v389 = vadd.f32 %v84, %v388
    %v390 = vpop.f32.mrb[0].mxu0
    %391 = vdwg.mxu0
    %v394 = vunpack.c.l.b16 %v52
    %v395 = vunpack.c.l.b16 %v53
    %v396 = vpack.c.b16 %v395, %v394
    %v398 = vand.u32 %v396, %v111
    %400 = vmatprep.subr.bf16.mxu0 0
    %401 = vmatpush1.bf16.msra.mxu0 %v398
    %402 = vmatprep.subr.bf16.mxu0 0
    %403 = vmatpush1.bf16.msra.mxu0 0
    %404 = vmatprep.subr.bf16.mxu0 0
    %405 = vmatpush1.bf16.msra.mxu0 0
    %406 = vmatprep.subr.bf16.mxu0 0
    %407 = vmatpush1.bf16.msra.mxu0 0
    %408 = vmatprep.subr.bf16.mxu0 0
    %409 = vmatpush1.bf16.msra.mxu0 0
    %410 = vmatprep.subr.bf16.mxu0 0
    %411 = vmatpush1.bf16.msra.mxu0 0
    %412 = vmatprep.subr.bf16.mxu0 0
    %413 = vmatpush1.bf16.msra.mxu0 0
    %414 = vmatprep.subr.bf16.mxu0 0
    %415 = vmatpush1.bf16.msra.mxu0 0
    %416 = vmatprep.subr.bf16.mxu0 0
    %417 = vmatpush1.bf16.msra.mxu0 0
    %418 = vmatprep.subr.bf16.mxu0 0
    %419 = vmatpush1.bf16.msra.mxu0 0
    %420 = vmatprep.subr.bf16.mxu0 0
    %421 = vmatpush1.bf16.msra.mxu0 0
    %422 = vmatprep.subr.bf16.mxu0 0
    %423 = vmatpush1.bf16.msra.mxu0 0
    %424 = vmatprep.subr.bf16.mxu0 0
    %425 = vmatpush1.bf16.msra.mxu0 0
    %426 = vmatprep.subr.bf16.mxu0 0
    %427 = vmatpush1.bf16.msra.mxu0 0
    %428 = vmatprep.subr.bf16.mxu0 0
    %429 = vmatpush1.bf16.msra.mxu0 0
    %430 = vmatprep.subr.bf16.mxu0 0
    %431 = vmatpush1.bf16.msra.mxu0 0
    %432 = vmatprep.mubr.bf16.mxu0 0
    %433 = vmatmul.mubr.bf16.gmra.mrb[0].mxu0 %v103
    %v434 = vpop.f32.mrb[0].mxu0
    %v435 = vadd.f32 %v69, %v434
    %v436 = vpop.f32.mrb[0].mxu0
    %v437 = vpop.f32.mrb[0].mxu0
    %v438 = vadd.f32 %v74, %v437
    %v439 = vpop.f32.mrb[0].mxu0
    %440 = vmatprep.mubr.bf16.mxu0 0
    %441 = vmatmul.mubr.bf16.gmra.mrb[0].mxu0 %v106
    %v442 = vpop.f32.mrb[0].mxu0
    %v443 = vadd.f32 %v79, %v442
    %v444 = vpop.f32.mrb[0].mxu0
    %v445 = vpop.f32.mrb[0].mxu0
    %v446 = vadd.f32 %v84, %v445
    %v447 = vpop.f32.mrb[0].mxu0
    %448 = vdwg.mxu0
    %v451 = vunpack.c.l.b16 %v54
    %v452 = vunpack.c.l.b16 %v55
    %v453 = vpack.c.b16 %v452, %v451
    %v455 = vand.u32 %v453, %v111
    %457 = vmatprep.subr.bf16.mxu0 0
    %458 = vmatpush1.bf16.msra.mxu0 %v455
    %459 = vmatprep.subr.bf16.mxu0 0
    %460 = vmatpush1.bf16.msra.mxu0 0
    %461 = vmatprep.subr.bf16.mxu0 0
    %462 = vmatpush1.bf16.msra.mxu0 0
    %463 = vmatprep.subr.bf16.mxu0 0
    %464 = vmatpush1.bf16.msra.mxu0 0
    %465 = vmatprep.subr.bf16.mxu0 0
    %466 = vmatpush1.bf16.msra.mxu0 0
    %467 = vmatprep.subr.bf16.mxu0 0
    %468 = vmatpush1.bf16.msra.mxu0 0
    %469 = vmatprep.subr.bf16.mxu0 0
    %470 = vmatpush1.bf16.msra.mxu0 0
    %471 = vmatprep.subr.bf16.mxu0 0
    %472 = vmatpush1.bf16.msra.mxu0 0
    %473 = vmatprep.subr.bf16.mxu0 0
    %474 = vmatpush1.bf16.msra.mxu0 0
    %475 = vmatprep.subr.bf16.mxu0 0
    %476 = vmatpush1.bf16.msra.mxu0 0
    %477 = vmatprep.subr.bf16.mxu0 0
    %478 = vmatpush1.bf16.msra.mxu0 0
    %479 = vmatprep.subr.bf16.mxu0 0
    %480 = vmatpush1.bf16.msra.mxu0 0
    %481 = vmatprep.subr.bf16.mxu0 0
    %482 = vmatpush1.bf16.msra.mxu0 0
    %483 = vmatprep.subr.bf16.mxu0 0
    %484 = vmatpush1.bf16.msra.mxu0 0
    %485 = vmatprep.subr.bf16.mxu0 0
    %486 = vmatpush1.bf16.msra.mxu0 0
    %487 = vmatprep.subr.bf16.mxu0 0
    %488 = vmatpush1.bf16.msra.mxu0 0
    %489 = vmatprep.mubr.bf16.mxu0 0
    %490 = vmatmul.mubr.bf16.gmra.mrb[0].mxu0 %v103
    %v491 = vpop.f32.mrb[0].mxu0
    %v492 = vadd.f32 %v69, %v491
    %v493 = vpop.f32.mrb[0].mxu0
    %v494 = vpop.f32.mrb[0].mxu0
    %v495 = vadd.f32 %v74, %v494
    %v496 = vpop.f32.mrb[0].mxu0
    %497 = vmatprep.mubr.bf16.mxu0 0
    %498 = vmatmul.mubr.bf16.gmra.mrb[0].mxu0 %v106
    %v499 = vpop.f32.mrb[0].mxu0
    %v500 = vadd.f32 %v79, %v499
    %v501 = vpop.f32.mrb[0].mxu0
    %v502 = vpop.f32.mrb[0].mxu0
    %v503 = vadd.f32 %v84, %v502
    %v504 = vpop.f32.mrb[0].mxu0
    %505 = vdwg.mxu0
    %v508 = vunpack.c.l.b16 %v56
    %v509 = vunpack.c.l.b16 %v57
    %v510 = vpack.c.b16 %v509, %v508
    %v512 = vand.u32 %v510, %v111
    %514 = vmatprep.subr.bf16.mxu0 0
    %515 = vmatpush1.bf16.msra.mxu0 %v512
    %516 = vmatprep.subr.bf16.mxu0 0
    %517 = vmatpush1.bf16.msra.mxu0 0
    %518 = vmatprep.subr.bf16.mxu0 0
    %519 = vmatpush1.bf16.msra.mxu0 0
    %520 = vmatprep.subr.bf16.mxu0 0
    %521 = vmatpush1.bf16.msra.mxu0 0
    %522 = vmatprep.subr.bf16.mxu0 0
    %523 = vmatpush1.bf16.msra.mxu0 0
    %524 = vmatprep.subr.bf16.mxu0 0
    %525 = vmatpush1.bf16.msra.mxu0 0
    %526 = vmatprep.subr.bf16.mxu0 0
    %527 = vmatpush1.bf16.msra.mxu0 0
    %528 = vmatprep.subr.bf16.mxu0 0
    %529 = vmatpush1.bf16.msra.mxu0 0
    %530 = vmatprep.subr.bf16.mxu0 0
    %531 = vmatpush1.bf16.msra.mxu0 0
    %532 = vmatprep.subr.bf16.mxu0 0
    %533 = vmatpush1.bf16.msra.mxu0 0
    %534 = vmatprep.subr.bf16.mxu0 0
    %535 = vmatpush1.bf16.msra.mxu0 0
    %536 = vmatprep.subr.bf16.mxu0 0
    %537 = vmatpush1.bf16.msra.mxu0 0
    %538 = vmatprep.subr.bf16.mxu0 0
    %539 = vmatpush1.bf16.msra.mxu0 0
    %540 = vmatprep.subr.bf16.mxu0 0
    %541 = vmatpush1.bf16.msra.mxu0 0
    %542 = vmatprep.subr.bf16.mxu0 0
    %543 = vmatpush1.bf16.msra.mxu0 0
    %544 = vmatprep.subr.bf16.mxu0 0
    %545 = vmatpush1.bf16.msra.mxu0 0
    %546 = vmatprep.mubr.bf16.mxu0 0
    %547 = vmatmul.mubr.bf16.gmra.mrb[0].mxu0 %v103
    %v548 = vpop.f32.mrb[0].mxu0
    %v549 = vadd.f32 %v69, %v548
    %v550 = vpop.f32.mrb[0].mxu0
    %v551 = vpop.f32.mrb[0].mxu0
    %v552 = vadd.f32 %v74, %v551
    %v553 = vpop.f32.mrb[0].mxu0
    %554 = vmatprep.mubr.bf16.mxu0 0
    %555 = vmatmul.mubr.bf16.gmra.mrb[0].mxu0 %v106
    %v556 = vpop.f32.mrb[0].mxu0
    %v557 = vadd.f32 %v79, %v556
    %v558 = vpop.f32.mrb[0].mxu0
    %v559 = vpop.f32.mrb[0].mxu0
    %v560 = vadd.f32 %v84, %v559
    %v561 = vpop.f32.mrb[0].mxu0
    %562 = vdwg.mxu0
    %v563 = vxor.u32 %v150, 2147483648
    %v564 = vxor.u32 %v153, 2147483648
    %v565 = vxor.u32 %v158, 2147483648
    %v566 = vxor.u32 %v161, 2147483648
    %v567 = vxor.u32 %v207, 2147483648
    %v568 = vxor.u32 %v210, 2147483648
    %v569 = vxor.u32 %v215, 2147483648
    %v570 = vxor.u32 %v218, 2147483648
    %v571 = vxor.u32 %v264, 2147483648
    %v572 = vxor.u32 %v267, 2147483648
    %v573 = vxor.u32 %v272, 2147483648
    %v574 = vxor.u32 %v275, 2147483648
    %v575 = vxor.u32 %v321, 2147483648
    %v576 = vxor.u32 %v324, 2147483648
    %v577 = vxor.u32 %v329, 2147483648
    %v578 = vxor.u32 %v332, 2147483648
    %v579 = vxor.u32 %v378, 2147483648
    %v580 = vxor.u32 %v381, 2147483648
    %v581 = vxor.u32 %v386, 2147483648
    %v582 = vxor.u32 %v389, 2147483648
    %v583 = vxor.u32 %v435, 2147483648
    %v584 = vxor.u32 %v438, 2147483648
    %v585 = vxor.u32 %v443, 2147483648
    %v586 = vxor.u32 %v446, 2147483648
    %v587 = vxor.u32 %v492, 2147483648
    %v588 = vxor.u32 %v495, 2147483648
    %v589 = vxor.u32 %v500, 2147483648
    %v590 = vxor.u32 %v503, 2147483648
    %v591 = vxor.u32 %v549, 2147483648
    %v592 = vxor.u32 %v552, 2147483648
    %v593 = vxor.u32 %v557, 2147483648
    %v594 = vxor.u32 %v560, 2147483648
    %v595 = vmul.f32 %v563, 1.442695
    %v596 = vpow.pop %v595
    %v597 = vmul.f32 %v564, 1.442695
    %v598 = vpow.pop %v597
    %v599 = vmul.f32 %v565, 1.442695
    %v600 = vpow.pop %v599
    %v601 = vmul.f32 %v566, 1.442695
    %v602 = vpow.pop %v601
    %v603 = vmul.f32 %v567, 1.442695
    %v604 = vpow.pop %v603
    %v605 = vmul.f32 %v568, 1.442695
    %v606 = vpow.pop %v605
    %v607 = vmul.f32 %v569, 1.442695
    %v608 = vpow.pop %v607
    %v609 = vmul.f32 %v570, 1.442695
    %v610 = vpow.pop %v609
    %v611 = vmul.f32 %v571, 1.442695
    %v612 = vpow.pop %v611
    %v613 = vmul.f32 %v572, 1.442695
    %v614 = vpow.pop %v613
    %v615 = vmul.f32 %v573, 1.442695
    %v616 = vpow.pop %v615
    %v617 = vmul.f32 %v574, 1.442695
    %v618 = vpow.pop %v617
    %v619 = vmul.f32 %v575, 1.442695
    %v620 = vpow.pop %v619
    %v621 = vmul.f32 %v576, 1.442695
    %v622 = vpow.pop %v621
    %v623 = vmul.f32 %v577, 1.442695
    %v624 = vpow.pop %v623
    %v625 = vmul.f32 %v578, 1.442695
    %v626 = vpow.pop %v625
    %v627 = vmul.f32 %v579, 1.442695
    %v628 = vpow.pop %v627
    %v629 = vmul.f32 %v580, 1.442695
    %v630 = vpow.pop %v629
    %v631 = vmul.f32 %v581, 1.442695
    %v632 = vpow.pop %v631
    %v633 = vmul.f32 %v582, 1.442695
    %v634 = vpow.pop %v633
    %v635 = vmul.f32 %v583, 1.442695
    %v636 = vpow.pop %v635
    %v637 = vmul.f32 %v584, 1.442695
    %v638 = vpow.pop %v637
    %v639 = vmul.f32 %v585, 1.442695
    %v640 = vpow.pop %v639
    %v641 = vmul.f32 %v586, 1.442695
    %v642 = vpow.pop %v641
    %v643 = vmul.f32 %v587, 1.442695
    %v644 = vpow.pop %v643
    %v645 = vmul.f32 %v588, 1.442695
    %v646 = vpow.pop %v645
    %v647 = vmul.f32 %v589, 1.442695
    %v648 = vpow.pop %v647
    %v649 = vmul.f32 %v590, 1.442695
    %v650 = vpow.pop %v649
    %v651 = vmul.f32 %v591, 1.442695
    %v652 = vpow.pop %v651
    %v653 = vmul.f32 %v592, 1.442695
    %v654 = vpow.pop %v653
    %v655 = vmul.f32 %v593, 1.442695
    %v656 = vpow.pop %v655
    %v657 = vmul.f32 %v594, 1.442695
    %v658 = vpow.pop %v657
    %v659 = vadd.f32 %v596, 1.0
    %v660 = vadd.f32 %v598, 1.0
    %v661 = vadd.f32 %v600, 1.0
    %v662 = vadd.f32 %v602, 1.0
    %v663 = vadd.f32 %v604, 1.0
    %v664 = vadd.f32 %v606, 1.0
    %v665 = vadd.f32 %v608, 1.0
    %v666 = vadd.f32 %v610, 1.0
    %v667 = vadd.f32 %v612, 1.0
    %v668 = vadd.f32 %v614, 1.0
    %v669 = vadd.f32 %v616, 1.0
    %v670 = vadd.f32 %v618, 1.0
    %v671 = vadd.f32 %v620, 1.0
    %v672 = vadd.f32 %v622, 1.0
    %v673 = vadd.f32 %v624, 1.0
    %v674 = vadd.f32 %v626, 1.0
    %v675 = vadd.f32 %v628, 1.0
    %v676 = vadd.f32 %v630, 1.0
    %v677 = vadd.f32 %v632, 1.0
    %v678 = vadd.f32 %v634, 1.0
    %v679 = vadd.f32 %v636, 1.0
    %v680 = vadd.f32 %v638, 1.0
    %v681 = vadd.f32 %v640, 1.0
    %v682 = vadd.f32 %v642, 1.0
    %v683 = vadd.f32 %v644, 1.0
    %v684 = vadd.f32 %v646, 1.0
    %v685 = vadd.f32 %v648, 1.0
    %v686 = vadd.f32 %v650, 1.0
    %v687 = vadd.f32 %v652, 1.0
    %v688 = vadd.f32 %v654, 1.0
    %v689 = vadd.f32 %v656, 1.0
    %v690 = vadd.f32 %v658, 1.0
    %v691 = vrcp.pop %v659
    %v692 = vmul.f32 1.0, %v691
    %v693 = vrcp.pop %v660
    %v694 = vmul.f32 1.0, %v693
    %v695 = vrcp.pop %v661
    %v696 = vmul.f32 1.0, %v695
    %v697 = vrcp.pop %v662
    %v698 = vmul.f32 1.0, %v697
    %v699 = vrcp.pop %v663
    %v700 = vmul.f32 1.0, %v699
    %v701 = vrcp.pop %v664
    %v702 = vmul.f32 1.0, %v701
    %v703 = vrcp.pop %v665
    %v704 = vmul.f32 1.0, %v703
    %v705 = vrcp.pop %v666
    %v706 = vmul.f32 1.0, %v705
    %v707 = vrcp.pop %v667
    %v708 = vmul.f32 1.0, %v707
    %v709 = vrcp.pop %v668
    %v710 = vmul.f32 1.0, %v709
    %v711 = vrcp.pop %v669
    %v712 = vmul.f32 1.0, %v711
    %v713 = vrcp.pop %v670
    %v714 = vmul.f32 1.0, %v713
    %v715 = vrcp.pop %v671
    %v716 = vmul.f32 1.0, %v715
    %v717 = vrcp.pop %v672
    %v718 = vmul.f32 1.0, %v717
    %v719 = vrcp.pop %v673
    %v720 = vmul.f32 1.0, %v719
    %v721 = vrcp.pop %v674
    %v722 = vmul.f32 1.0, %v721
    %v723 = vrcp.pop %v675
    %v724 = vmul.f32 1.0, %v723
    %v725 = vrcp.pop %v676
    %v726 = vmul.f32 1.0, %v725
    %v727 = vrcp.pop %v677
    %v728 = vmul.f32 1.0, %v727
    %v729 = vrcp.pop %v678
    %v730 = vmul.f32 1.0, %v729
    %v731 = vrcp.pop %v679
    %v732 = vmul.f32 1.0, %v731
    %v733 = vrcp.pop %v680
    %v734 = vmul.f32 1.0, %v733
    %v735 = vrcp.pop %v681
    %v736 = vmul.f32 1.0, %v735
    %v737 = vrcp.pop %v682
    %v738 = vmul.f32 1.0, %v737
    %v739 = vrcp.pop %v683
    %v740 = vmul.f32 1.0, %v739
    %v741 = vrcp.pop %v684
    %v742 = vmul.f32 1.0, %v741
    %v743 = vrcp.pop %v685
    %v744 = vmul.f32 1.0, %v743
    %v745 = vrcp.pop %v686
    %v746 = vmul.f32 1.0, %v745
    %v747 = vrcp.pop %v687
    %v748 = vmul.f32 1.0, %v747
    %v749 = vrcp.pop %v688
    %v750 = vmul.f32 1.0, %v749
    %v751 = vrcp.pop %v689
    %v752 = vmul.f32 1.0, %v751
    %v753 = vrcp.pop %v690
    %v754 = vmul.f32 1.0, %v753
    %v755 = vmul.f32 %v150, %v692
    %v756 = vmul.f32 %v153, %v694
    %v757 = vmul.f32 %v158, %v696
    %v758 = vmul.f32 %v161, %v698
    %v759 = vmul.f32 %v207, %v700
    %v760 = vmul.f32 %v210, %v702
    %v761 = vmul.f32 %v215, %v704
    %v762 = vmul.f32 %v218, %v706
    %v763 = vmul.f32 %v264, %v708
    %v764 = vmul.f32 %v267, %v710
    %v765 = vmul.f32 %v272, %v712
    %v766 = vmul.f32 %v275, %v714
    %v767 = vmul.f32 %v321, %v716
    %v768 = vmul.f32 %v324, %v718
    %v769 = vmul.f32 %v329, %v720
    %v770 = vmul.f32 %v332, %v722
    %v771 = vmul.f32 %v378, %v724
    %v772 = vmul.f32 %v381, %v726
    %v773 = vmul.f32 %v386, %v728
    %v774 = vmul.f32 %v389, %v730
    %v775 = vmul.f32 %v435, %v732
    %v776 = vmul.f32 %v438, %v734
    %v777 = vmul.f32 %v443, %v736
    %v778 = vmul.f32 %v446, %v738
    %v779 = vmul.f32 %v492, %v740
    %v780 = vmul.f32 %v495, %v742
    %v781 = vmul.f32 %v500, %v744
    %v782 = vmul.f32 %v503, %v746
    %v783 = vmul.f32 %v549, %v748
    %v784 = vmul.f32 %v552, %v750
    %v785 = vmul.f32 %v557, %v752
    %v786 = vmul.f32 %v560, %v754
    %v787 = vld [vmem:[#allocation2] sm:$0xff]
    %vm788 = vcmask 523264
    %v789 = vsel %vm788, %v755, 0.0
    %790 = vadd.xlane.f32.xlu0 %v789
    %v791 = vpop.xlane.xlu0 %790
    %v792 = vsel %vm788, %v756, 0.0
    %793 = vadd.xlane.f32.xlu0 %v792
    %v794 = vpop.xlane.xlu0 %793
    %v795 = vsel %vm788, %v757, 0.0
    %796 = vadd.xlane.f32.xlu0 %v795
    %v797 = vpop.xlane.xlu0 %796
    %v798 = vsel %vm788, %v758, 0.0
    %799 = vadd.xlane.f32.xlu0 %v798
    %v800 = vpop.xlane.xlu0 %799
    %v801 = vsel %vm788, %v759, 0.0
    %802 = vadd.xlane.f32.xlu0 %v801
    %v803 = vpop.xlane.xlu0 %802
    %v804 = vsel %vm788, %v760, 0.0
    %805 = vadd.xlane.f32.xlu0 %v804
    %v806 = vpop.xlane.xlu0 %805
    %v807 = vsel %vm788, %v761, 0.0
    %808 = vadd.xlane.f32.xlu0 %v807
    %v809 = vpop.xlane.xlu0 %808
    %v810 = vsel %vm788, %v762, 0.0
    %811 = vadd.xlane.f32.xlu0 %v810
    %v812 = vpop.xlane.xlu0 %811
    %v813 = vsel %vm788, %v763, 0.0
    %814 = vadd.xlane.f32.xlu0 %v813
    %v815 = vpop.xlane.xlu0 %814
    %v816 = vsel %vm788, %v764, 0.0
    %817 = vadd.xlane.f32.xlu0 %v816
    %v818 = vpop.xlane.xlu0 %817
    %v819 = vsel %vm788, %v765, 0.0
    %820 = vadd.xlane.f32.xlu0 %v819
    %v821 = vpop.xlane.xlu0 %820
    %v822 = vsel %vm788, %v766, 0.0
    %823 = vadd.xlane.f32.xlu0 %v822
    %v824 = vpop.xlane.xlu0 %823
    %v825 = vsel %vm788, %v767, 0.0
    %826 = vadd.xlane.f32.xlu0 %v825
    %v827 = vpop.xlane.xlu0 %826
    %v828 = vsel %vm788, %v768, 0.0
    %829 = vadd.xlane.f32.xlu0 %v828
    %v830 = vpop.xlane.xlu0 %829
    %v831 = vsel %vm788, %v769, 0.0
    %832 = vadd.xlane.f32.xlu0 %v831
    %v833 = vpop.xlane.xlu0 %832
    %v834 = vsel %vm788, %v770, 0.0
    %835 = vadd.xlane.f32.xlu0 %v834
    %v836 = vpop.xlane.xlu0 %835
    %v837 = vsel %vm788, %v771, 0.0
    %838 = vadd.xlane.f32.xlu0 %v837
    %v839 = vpop.xlane.xlu0 %838
    %v840 = vsel %vm788, %v772, 0.0
    %841 = vadd.xlane.f32.xlu0 %v840
    %v842 = vpop.xlane.xlu0 %841
    %v843 = vsel %vm788, %v773, 0.0
    %844 = vadd.xlane.f32.xlu0 %v843
    %v845 = vpop.xlane.xlu0 %844
    %v846 = vsel %vm788, %v774, 0.0
    %847 = vadd.xlane.f32.xlu0 %v846
    %v848 = vpop.xlane.xlu0 %847
    %v849 = vsel %vm788, %v775, 0.0
    %850 = vadd.xlane.f32.xlu0 %v849
    %v851 = vpop.xlane.xlu0 %850
    %v852 = vsel %vm788, %v776, 0.0
    %853 = vadd.xlane.f32.xlu0 %v852
    %v854 = vpop.xlane.xlu0 %853
    %v855 = vsel %vm788, %v777, 0.0
    %856 = vadd.xlane.f32.xlu0 %v855
    %v857 = vpop.xlane.xlu0 %856
    %v858 = vsel %vm788, %v778, 0.0
    %859 = vadd.xlane.f32.xlu0 %v858
    %v860 = vpop.xlane.xlu0 %859
    %v861 = vsel %vm788, %v779, 0.0
    %862 = vadd.xlane.f32.xlu0 %v861
    %v863 = vpop.xlane.xlu0 %862
    %v864 = vsel %vm788, %v780, 0.0
    %865 = vadd.xlane.f32.xlu0 %v864
    %v866 = vpop.xlane.xlu0 %865
    %v867 = vsel %vm788, %v781, 0.0
    %868 = vadd.xlane.f32.xlu0 %v867
    %v869 = vpop.xlane.xlu0 %868
    %v870 = vsel %vm788, %v782, 0.0
    %871 = vadd.xlane.f32.xlu0 %v870
    %v872 = vpop.xlane.xlu0 %871
    %v873 = vsel %vm788, %v783, 0.0
    %874 = vadd.xlane.f32.xlu0 %v873
    %v875 = vpop.xlane.xlu0 %874
    %v876 = vsel %vm788, %v784, 0.0
    %877 = vadd.xlane.f32.xlu0 %v876
    %v878 = vpop.xlane.xlu0 %877
    %v879 = vsel %vm788, %v785, 0.0
    %880 = vadd.xlane.f32.xlu0 %v879
    %v881 = vpop.xlane.xlu0 %880
    %v882 = vsel %vm788, %v786, 0.0
    %883 = vadd.xlane.f32.xlu0 %v882
    %v884 = vpop.xlane.xlu0 %883
    %v917 = vlaneseq
    %v918 = vand.u32 %v917, 127
    %v919 = vlaneseq
    %v920 = vshrl.u32 %v919, 7
    %v921 = vsub.s32 %v918, %v920
    %v922 = vrot.slane %v791, %v921
    %v923 = vadd.s32 %v918, 4294967288
    %v924 = vlaneseq
    %v925 = vshrl.u32 %v924, 7
    %v926 = vsub.s32 %v923, %v925
    %v927 = vrot.slane %v794, %v926
    %vm928 = vcmask 130112
    %v929 = vsel %vm928, %v927, %v922
    %v930 = vadd.s32 %v918, 4294967280
    %v931 = vlaneseq
    %v932 = vshrl.u32 %v931, 7
    %v933 = vsub.s32 %v930, %v932
    %v934 = vrot.slane %v797, %v933
    %vm935 = vcmask 195712
    %v936 = vsel %vm935, %v934, %v929
    %v937 = vadd.s32 %v918, 4294967272
    %v938 = vlaneseq
    %v939 = vshrl.u32 %v938, 7
    %v940 = vsub.s32 %v937, %v939
    %v941 = vrot.slane %v800, %v940
    %vm942 = vcmask 261312
    %v943 = vsel %vm942, %v941, %v936
    %v944 = vlaneseq
    %v945 = vshrl.u32 %v944, 7
    %v946 = vsub.s32 %v918, %v945
    %v947 = vrot.slane %v803, %v946
    %v948 = vlaneseq
    %v949 = vshrl.u32 %v948, 7
    %v950 = vsub.s32 %v923, %v949
    %v951 = vrot.slane %v806, %v950
    %v952 = vsel %vm928, %v951, %v947
    %v953 = vlaneseq
    %v954 = vshrl.u32 %v953, 7
    %v955 = vsub.s32 %v930, %v954
    %v956 = vrot.slane %v809, %v955
    %v957 = vsel %vm935, %v956, %v952
    %v958 = vlaneseq
    %v959 = vshrl.u32 %v958, 7
    %v960 = vsub.s32 %v937, %v959
    %v961 = vrot.slane %v812, %v960
    %v962 = vsel %vm942, %v961, %v957
    %v963 = vlaneseq
    %v964 = vshrl.u32 %v963, 7
    %v965 = vsub.s32 %v918, %v964
    %v966 = vrot.slane %v815, %v965
    %v967 = vlaneseq
    %v968 = vshrl.u32 %v967, 7
    %v969 = vsub.s32 %v923, %v968
    %v970 = vrot.slane %v818, %v969
    %v971 = vsel %vm928, %v970, %v966
    %v972 = vlaneseq
    %v973 = vshrl.u32 %v972, 7
    %v974 = vsub.s32 %v930, %v973
    %v975 = vrot.slane %v821, %v974
    %v976 = vsel %vm935, %v975, %v971
    %v977 = vlaneseq
    %v978 = vshrl.u32 %v977, 7
    %v979 = vsub.s32 %v937, %v978
    %v980 = vrot.slane %v824, %v979
    %v981 = vsel %vm942, %v980, %v976
    %v982 = vlaneseq
    %v983 = vshrl.u32 %v982, 7
    %v984 = vsub.s32 %v918, %v983
    %v985 = vrot.slane %v827, %v984
    %v986 = vlaneseq
    %v987 = vshrl.u32 %v986, 7
    %v988 = vsub.s32 %v923, %v987
    %v989 = vrot.slane %v830, %v988
    %v990 = vsel %vm928, %v989, %v985
    %v991 = vlaneseq
    %v992 = vshrl.u32 %v991, 7
    %v993 = vsub.s32 %v930, %v992
    %v994 = vrot.slane %v833, %v993
    %v995 = vsel %vm935, %v994, %v990
    %v996 = vlaneseq
    %v997 = vshrl.u32 %v996, 7
    %v998 = vsub.s32 %v937, %v997
    %v999 = vrot.slane %v836, %v998
    %v1000 = vsel %vm942, %v999, %v995
    %v1001 = vlaneseq
    %v1002 = vshrl.u32 %v1001, 7
    %v1003 = vsub.s32 %v918, %v1002
    %v1004 = vrot.slane %v839, %v1003
    %v1005 = vlaneseq
    %v1006 = vshrl.u32 %v1005, 7
    %v1007 = vsub.s32 %v923, %v1006
    %v1008 = vrot.slane %v842, %v1007
    %v1009 = vsel %vm928, %v1008, %v1004
    %v1010 = vlaneseq
    %v1011 = vshrl.u32 %v1010, 7
    %v1012 = vsub.s32 %v930, %v1011
    %v1013 = vrot.slane %v845, %v1012
    %v1014 = vsel %vm935, %v1013, %v1009
    %v1015 = vlaneseq
    %v1016 = vshrl.u32 %v1015, 7
    %v1017 = vsub.s32 %v937, %v1016
    %v1018 = vrot.slane %v848, %v1017
    %v1019 = vsel %vm942, %v1018, %v1014
    %v1020 = vlaneseq
    %v1021 = vshrl.u32 %v1020, 7
    %v1022 = vsub.s32 %v918, %v1021
    %v1023 = vrot.slane %v851, %v1022
    %v1024 = vlaneseq
    %v1025 = vshrl.u32 %v1024, 7
    %v1026 = vsub.s32 %v923, %v1025
    %v1027 = vrot.slane %v854, %v1026
    %v1028 = vsel %vm928, %v1027, %v1023
    %v1029 = vlaneseq
    %v1030 = vshrl.u32 %v1029, 7
    %v1031 = vsub.s32 %v930, %v1030
    %v1032 = vrot.slane %v857, %v1031
    %v1033 = vsel %vm935, %v1032, %v1028
    %v1034 = vlaneseq
    %v1035 = vshrl.u32 %v1034, 7
    %v1036 = vsub.s32 %v937, %v1035
    %v1037 = vrot.slane %v860, %v1036
    %v1038 = vsel %vm942, %v1037, %v1033
    %v1039 = vlaneseq
    %v1040 = vshrl.u32 %v1039, 7
    %v1041 = vsub.s32 %v918, %v1040
    %v1042 = vrot.slane %v863, %v1041
    %v1043 = vlaneseq
    %v1044 = vshrl.u32 %v1043, 7
    %v1045 = vsub.s32 %v923, %v1044
    %v1046 = vrot.slane %v866, %v1045
    %v1047 = vsel %vm928, %v1046, %v1042
    %v1048 = vlaneseq
    %v1049 = vshrl.u32 %v1048, 7
    %v1050 = vsub.s32 %v930, %v1049
    %v1051 = vrot.slane %v869, %v1050
    %v1052 = vsel %vm935, %v1051, %v1047
    %v1053 = vlaneseq
    %v1054 = vshrl.u32 %v1053, 7
    %v1055 = vsub.s32 %v937, %v1054
    %v1056 = vrot.slane %v872, %v1055
    %v1057 = vsel %vm942, %v1056, %v1052
    %v1058 = vlaneseq
    %v1059 = vshrl.u32 %v1058, 7
    %v1060 = vsub.s32 %v918, %v1059
    %v1061 = vrot.slane %v875, %v1060
    %v1062 = vlaneseq
    %v1063 = vshrl.u32 %v1062, 7
    %v1064 = vsub.s32 %v923, %v1063
    %v1065 = vrot.slane %v878, %v1064
    %v1066 = vsel %vm928, %v1065, %v1061
    %v1067 = vlaneseq
    %v1068 = vshrl.u32 %v1067, 7
    %v1069 = vsub.s32 %v930, %v1068
    %v1070 = vrot.slane %v881, %v1069
    %v1071 = vsel %vm935, %v1070, %v1066
    %v1072 = vlaneseq
    %v1073 = vshrl.u32 %v1072, 7
    %v1074 = vsub.s32 %v937, %v1073
    %v1075 = vrot.slane %v884, %v1074
    %v1076 = vsel %vm942, %v1075, %v1071
    %vm1077 = vcmask 1041409
    %v1078 = vsel %vm1077, %v962, %v943
    %vm1079 = vcmask 1042434
    %v1080 = vsel %vm1079, %v981, %v1078
    %vm1081 = vcmask 1043459
    %v1082 = vsel %vm1081, %v1000, %v1080
    %vm1083 = vcmask 1044484
    %v1084 = vsel %vm1083, %v1019, %v1082
    %vm1085 = vcmask 1045509
    %v1086 = vsel %vm1085, %v1038, %v1084
    %vm1087 = vcmask 1046534
    %v1088 = vsel %vm1087, %v1057, %v1086
    %vm1089 = vcmask 1047559
    %v1090 = vsel %vm1089, %v1076, %v1088
    %v1092 = vadd.f32 %v787, %v1090
    %vm1093 = vcmask 261120
    %1094 = vst.msk [vmem:[#allocation2] sm:$0xff] %vm1093, %v1092
    // Predicated region
    $region34: #{tpu_custom_call.1} parent=1 // pred_check
      %p1095 = pneg %p36
    $region35: #{tpu_custom_call.1} parent=1 // pred_check_branch
      %1097 = sbr.rel (%p1095) target = $region37
    $region36: #{tpu_custom_call.1} parent=1 // pred_region
      %v1098 = vld [vmem:[#allocation2] sm:$0xff]
      %v1099 = vmul.f32 %v1098, 0.015625
      %v1100 = vpack.c.bf16 %v1099, %v1099
      %v1101 = vld [vmem:[%s3] sm:$0xff]
      %v1102 = vld [vmem:[%s3 + $0x8] sm:$0xff]
      %v1103 = vld [vmem:[%s3 + $0x10] sm:$0xff]
      %v1104 = vld [vmem:[%s3 + $0x18] sm:$0xff]
      %v1105 = vld [vmem:[%s3 + $0x20] sm:$0xff]
      %v1106 = vld [vmem:[%s3 + $0x28] sm:$0xff]
      %v1107 = vld [vmem:[%s3 + $0x30] sm:$0xff]
      %v1108 = vld [vmem:[%s3 + $0x38] sm:$0xff]
      %v1109 = vld [vmem:[%s3 + $0x40] sm:$0xff]
      %v1110 = vld [vmem:[%s3 + $0x48] sm:$0xff]
      %v1111 = vld [vmem:[%s3 + $0x50] sm:$0xff]
      %v1112 = vld [vmem:[%s3 + $0x58] sm:$0xff]
      %v1113 = vld [vmem:[%s3 + $0x60] sm:$0xff]
      %v1114 = vld [vmem:[%s3 + $0x68] sm:$0xff]
      %v1115 = vld [vmem:[%s3 + $0x70] sm:$0xff]
      %v1116 = vld [vmem:[%s3 + $0x78] sm:$0xff]
      %v1117 = vld [vmem:[%s3 + $0x80] sm:$0xff]
      %v1118 = vld [vmem:[%s3 + $0x88] sm:$0xff]
      %v1119 = vld [vmem:[%s3 + $0x90] sm:$0xff]
      %v1120 = vld [vmem:[%s3 + $0x98] sm:$0xff]
      %v1121 = vld [vmem:[%s4] sm:$0xff]
      %v1122 = vld [vmem:[%s4 + $0x8] sm:$0x3]
      %v1125 = vlaneseq
      %v1126 = vshrl.u32 %v1125, 7
      %v1127 = vsub.s32 0, %v1126
      %v1128 = vrot.slane %v1121, %v1127
      %v1129 = vlaneseq
      %v1130 = vshrl.u32 %v1129, 7
      %v1131 = vsub.s32 1, %v1130
      %v1132 = vrot.slane %v1121, %v1131
      %v1133 = vlaneseq
      %v1134 = vshrl.u32 %v1133, 7
      %v1135 = vsub.s32 2, %v1134
      %v1136 = vrot.slane %v1121, %v1135
      %v1137 = vlaneseq
      %v1138 = vshrl.u32 %v1137, 7
      %v1139 = vsub.s32 3, %v1138
      %v1140 = vrot.slane %v1121, %v1139
      %v1141 = vlaneseq
      %v1142 = vshrl.u32 %v1141, 7
      %v1143 = vsub.s32 4, %v1142
      %v1144 = vrot.slane %v1121, %v1143
      %v1145 = vlaneseq
      %v1146 = vshrl.u32 %v1145, 7
      %v1147 = vsub.s32 5, %v1146
      %v1148 = vrot.slane %v1121, %v1147
      %v1149 = vlaneseq
      %v1150 = vshrl.u32 %v1149, 7
      %v1151 = vsub.s32 6, %v1150
      %v1152 = vrot.slane %v1121, %v1151
      %v1153 = vlaneseq
      %v1154 = vshrl.u32 %v1153, 7
      %v1155 = vsub.s32 7, %v1154
      %v1156 = vrot.slane %v1121, %v1155
      %v1157 = vlaneseq
      %v1158 = vshrl.u32 %v1157, 7
      %v1159 = vsub.s32 0, %v1158
      %v1160 = vrot.slane %v1122, %v1159
      %v1161 = vlaneseq
      %v1162 = vshrl.u32 %v1161, 7
      %v1163 = vsub.s32 1, %v1162
      %v1164 = vrot.slane %v1122, %v1163
      %v1195 = vunpack.c.l.b16 %v1101
      %v1196 = vunpack.c.h.b16 %v1101
      %v1197 = vunpack.c.l.b16 %v1102
      %v1198 = vunpack.c.h.b16 %v1102
      %v1199 = vunpack.c.l.b16 %v1103
      %v1200 = vunpack.c.h.b16 %v1103
      %v1201 = vunpack.c.l.b16 %v1104
      %v1202 = vunpack.c.h.b16 %v1104
      %v1203 = vunpack.c.l.b16 %v1105
      %v1204 = vunpack.c.h.b16 %v1105
      %v1205 = vunpack.c.l.b16 %v1106
      %v1206 = vunpack.c.h.b16 %v1106
      %v1207 = vunpack.c.l.b16 %v1107
      %v1208 = vunpack.c.h.b16 %v1107
      %v1209 = vunpack.c.l.b16 %v1108
      %v1210 = vunpack.c.h.b16 %v1108
      %v1211 = vunpack.c.l.b16 %v1109
      %v1212 = vunpack.c.h.b16 %v1109
      %v1213 = vunpack.c.l.b16 %v1110
      %v1214 = vunpack.c.h.b16 %v1110
      %v1215 = vunpack.c.l.b16 %v1111
      %v1216 = vunpack.c.h.b16 %v1111
      %v1217 = vunpack.c.l.b16 %v1112
      %v1218 = vunpack.c.h.b16 %v1112
      %v1219 = vunpack.c.l.b16 %v1113
      %v1220 = vunpack.c.h.b16 %v1113
      %v1221 = vunpack.c.l.b16 %v1114
      %v1222 = vunpack.c.h.b16 %v1114
      %v1223 = vunpack.c.l.b16 %v1115
      %v1224 = vunpack.c.h.b16 %v1115
      %v1225 = vunpack.c.l.b16 %v1116
      %v1226 = vunpack.c.h.b16 %v1116
      %v1227 = vunpack.c.l.b16 %v1117
      %v1228 = vunpack.c.h.b16 %v1117
      %v1229 = vunpack.c.l.b16 %v1118
      %v1230 = vunpack.c.h.b16 %v1118
      %v1231 = vunpack.c.l.b16 %v1119
      %v1232 = vunpack.c.h.b16 %v1119
      %v1233 = vunpack.c.l.b16 %v1120
      %v1234 = vunpack.c.h.b16 %v1120
      %v1235 = vpack.c.b16 %v1205, %v1195
      %v1236 = vpack.c.b16 %v1206, %v1196
      %v1237 = vpack.c.b16 %v1207, %v1197
      %v1238 = vpack.c.b16 %v1208, %v1198
      %v1239 = vpack.c.b16 %v1209, %v1199
      %v1240 = vpack.c.b16 %v1210, %v1200
      %v1241 = vpack.c.b16 %v1211, %v1201
      %v1242 = vpack.c.b16 %v1212, %v1202
      %v1243 = vpack.c.b16 %v1213, %v1203
      %v1244 = vpack.c.b16 %v1214, %v1204
      %v1245 = vpack.c.b16 %v1225, %v1215
      %v1246 = vpack.c.b16 %v1226, %v1216
      %v1247 = vpack.c.b16 %v1227, %v1217
      %v1248 = vpack.c.b16 %v1228, %v1218
      %v1249 = vpack.c.b16 %v1229, %v1219
      %v1250 = vpack.c.b16 %v1230, %v1220
      %v1251 = vpack.c.b16 %v1231, %v1221
      %v1252 = vpack.c.b16 %v1232, %v1222
      %v1253 = vpack.c.b16 %v1233, %v1223
      %v1254 = vpack.c.b16 %v1234, %v1224
      %v1276 = vsel %vm1093, %v1100, 0
      %1278 = vmatprep.subr.bf16.mxu0 %v1236
      %1279 = vmatpush1.bf16.msra.mxu0 %v1235
      %1280 = vmatprep.subr.bf16.mxu0 %v1246
      %1281 = vmatpush1.bf16.msra.mxu0 %v1245
      %1282 = vmatprep.subr.bf16.mxu0 0
      %1283 = vmatpush1.bf16.msra.mxu0 0
      %1284 = vmatprep.subr.bf16.mxu0 0
      %1285 = vmatpush1.bf16.msra.mxu0 0
      %1286 = vmatprep.subr.bf16.mxu0 0
      %1287 = vmatpush1.bf16.msra.mxu0 0
      %1288 = vmatprep.subr.bf16.mxu0 0
      %1289 = vmatpush1.bf16.msra.mxu0 0
      %1290 = vmatprep.subr.bf16.mxu0 0
      %1291 = vmatpush1.bf16.msra.mxu0 0
      %1292 = vmatprep.subr.bf16.mxu0 0
      %1293 = vmatpush1.bf16.msra.mxu0 0
      %1294 = vmatprep.subr.bf16.mxu0 0
      %1295 = vmatpush1.bf16.msra.mxu0 0
      %1296 = vmatprep.subr.bf16.mxu0 0
      %1297 = vmatpush1.bf16.msra.mxu0 0
      %1298 = vmatprep.subr.bf16.mxu0 0
      %1299 = vmatpush1.bf16.msra.mxu0 0
      %1300 = vmatprep.subr.bf16.mxu0 0
      %1301 = vmatpush1.bf16.msra.mxu0 0
      %1302 = vmatprep.subr.bf16.mxu0 0
      %1303 = vmatpush1.bf16.msra.mxu0 0
      %1304 = vmatprep.subr.bf16.mxu0 0
      %1305 = vmatpush1.bf16.msra.mxu0 0
      %1306 = vmatprep.subr.bf16.mxu0 0
      %1307 = vmatpush1.bf16.msra.mxu0 0
      %1308 = vmatprep.subr.bf16.mxu0 0
      %1309 = vmatpush1.bf16.msra.mxu0 0
      %1310 = vmatprep.mubr.bf16.mxu0 0
      %1311 = vmatmul.mubr.bf16.gmra.mrb[0].mxu0 %v1276
      %v1312 = vpop.f32.mrb[0].mxu0
      %v1313 = vadd.f32 %v1128, %v1312
      %v1314 = vpop.f32.mrb[0].mxu0
      %v1315 = vadd.f32 %v1132, %v1314
      %v1316 = vpop.f32.mrb[0].mxu0
      %v1317 = vpop.f32.mrb[0].mxu0
      %1318 = vdwg.mxu0
      %1319 = vmatprep.subr.bf16.mxu0 %v1238
      %1320 = vmatpush1.bf16.msra.mxu0 %v1237
      %1321 = vmatprep.subr.bf16.mxu0 %v1248
      %1322 = vmatpush1.bf16.msra.mxu0 %v1247
      %1323 = vmatprep.subr.bf16.mxu0 0
      %1324 = vmatpush1.bf16.msra.mxu0 0
      %1325 = vmatprep.subr.bf16.mxu0 0
      %1326 = vmatpush1.bf16.msra.mxu0 0
      %1327 = vmatprep.subr.bf16.mxu0 0
      %1328 = vmatpush1.bf16.msra.mxu0 0
      %1329 = vmatprep.subr.bf16.mxu0 0
      %1330 = vmatpush1.bf16.msra.mxu0 0
      %1331 = vmatprep.subr.bf16.mxu0 0
      %1332 = vmatpush1.bf16.msra.mxu0 0
      %1333 = vmatprep.subr.bf16.mxu0 0
      %1334 = vmatpush1.bf16.msra.mxu0 0
      %1335 = vmatprep.subr.bf16.mxu0 0
      %1336 = vmatpush1.bf16.msra.mxu0 0
      %1337 = vmatprep.subr.bf16.mxu0 0
      %1338 = vmatpush1.bf16.msra.mxu0 0
      %1339 = vmatprep.subr.bf16.mxu0 0
      %1340 = vmatpush1.bf16.msra.mxu0 0
      %1341 = vmatprep.subr.bf16.mxu0 0
      %1342 = vmatpush1.bf16.msra.mxu0 0
      %1343 = vmatprep.subr.bf16.mxu0 0
      %1344 = vmatpush1.bf16.msra.mxu0 0
      %1345 = vmatprep.subr.bf16.mxu0 0
      %1346 = vmatpush1.bf16.msra.mxu0 0
      %1347 = vmatprep.subr.bf16.mxu0 0
      %1348 = vmatpush1.bf16.msra.mxu0 0
      %1349 = vmatprep.subr.bf16.mxu0 0
      %1350 = vmatpush1.bf16.msra.mxu0 0
      %1351 = vmatprep.mubr.bf16.mxu0 0
      %1352 = vmatmul.mubr.bf16.gmra.mrb[0].mxu0 %v1276
      %v1353 = vpop.f32.mrb[0].mxu0
      %v1354 = vadd.f32 %v1136, %v1353
      %v1355 = vpop.f32.mrb[0].mxu0
      %v1356 = vadd.f32 %v1140, %v1355
      %v1357 = vpop.f32.mrb[0].mxu0
      %v1358 = vpop.f32.mrb[0].mxu0
      %1359 = vdwg.mxu0
      %1360 = vmatprep.subr.bf16.mxu0 %v1240
      %1361 = vmatpush1.bf16.msra.mxu0 %v1239
      %1362 = vmatprep.subr.bf16.mxu0 %v1250
      %1363 = vmatpush1.bf16.msra.mxu0 %v1249
      %1364 = vmatprep.subr.bf16.mxu0 0
      %1365 = vmatpush1.bf16.msra.mxu0 0
      %1366 = vmatprep.subr.bf16.mxu0 0
      %1367 = vmatpush1.bf16.msra.mxu0 0
      %1368 = vmatprep.subr.bf16.mxu0 0
      %1369 = vmatpush1.bf16.msra.mxu0 0
      %1370 = vmatprep.subr.bf16.mxu0 0
      %1371 = vmatpush1.bf16.msra.mxu0 0
      %1372 = vmatprep.subr.bf16.mxu0 0
      %1373 = vmatpush1.bf16.msra.mxu0 0
      %1374 = vmatprep.subr.bf16.mxu0 0
      %1375 = vmatpush1.bf16.msra.mxu0 0
      %1376 = vmatprep.subr.bf16.mxu0 0
      %1377 = vmatpush1.bf16.msra.mxu0 0
      %1378 = vmatprep.subr.bf16.mxu0 0
      %1379 = vmatpush1.bf16.msra.mxu0 0
      %1380 = vmatprep.subr.bf16.mxu0 0
      %1381 = vmatpush1.bf16.msra.mxu0 0
      %1382 = vmatprep.subr.bf16.mxu0 0
      %1383 = vmatpush1.bf16.msra.mxu0 0
      %1384 = vmatprep.subr.bf16.mxu0 0
      %1385 = vmatpush1.bf16.msra.mxu0 0
      %1386 = vmatprep.subr.bf16.mxu0 0
      %1387 = vmatpush1.bf16.msra.mxu0 0
      %1388 = vmatprep.subr.bf16.mxu0 0
      %1389 = vmatpush1.bf16.msra.mxu0 0
      %1390 = vmatprep.subr.bf16.mxu0 0
      %1391 = vmatpush1.bf16.msra.mxu0 0
      %1392 = vmatprep.mubr.bf16.mxu0 0
      %1393 = vmatmul.mubr.bf16.gmra.mrb[0].mxu0 %v1276
      %v1394 = vpop.f32.mrb[0].mxu0
      %v1395 = vadd.f32 %v1144, %v1394
      %v1396 = vpop.f32.mrb[0].mxu0
      %v1397 = vadd.f32 %v1148, %v1396
      %v1398 = vpop.f32.mrb[0].mxu0
      %v1399 = vpop.f32.mrb[0].mxu0
      %1400 = vdwg.mxu0
      %1401 = vmatprep.subr.bf16.mxu0 %v1242
      %1402 = vmatpush1.bf16.msra.mxu0 %v1241
      %1403 = vmatprep.subr.bf16.mxu0 %v1252
      %1404 = vmatpush1.bf16.msra.mxu0 %v1251
      %1405 = vmatprep.subr.bf16.mxu0 0
      %1406 = vmatpush1.bf16.msra.mxu0 0
      %1407 = vmatprep.subr.bf16.mxu0 0
      %1408 = vmatpush1.bf16.msra.mxu0 0
      %1409 = vmatprep.subr.bf16.mxu0 0
      %1410 = vmatpush1.bf16.msra.mxu0 0
      %1411 = vmatprep.subr.bf16.mxu0 0
      %1412 = vmatpush1.bf16.msra.mxu0 0
      %1413 = vmatprep.subr.bf16.mxu0 0
      %1414 = vmatpush1.bf16.msra.mxu0 0
      %1415 = vmatprep.subr.bf16.mxu0 0
      %1416 = vmatpush1.bf16.msra.mxu0 0
      %1417 = vmatprep.subr.bf16.mxu0 0
      %1418 = vmatpush1.bf16.msra.mxu0 0
      %1419 = vmatprep.subr.bf16.mxu0 0
      %1420 = vmatpush1.bf16.msra.mxu0 0
      %1421 = vmatprep.subr.bf16.mxu0 0
      %1422 = vmatpush1.bf16.msra.mxu0 0
      %1423 = vmatprep.subr.bf16.mxu0 0
      %1424 = vmatpush1.bf16.msra.mxu0 0
      %1425 = vmatprep.subr.bf16.mxu0 0
      %1426 = vmatpush1.bf16.msra.mxu0 0
      %1427 = vmatprep.subr.bf16.mxu0 0
      %1428 = vmatpush1.bf16.msra.mxu0 0
      %1429 = vmatprep.subr.bf16.mxu0 0
      %1430 = vmatpush1.bf16.msra.mxu0 0
      %1431 = vmatprep.subr.bf16.mxu0 0
      %1432 = vmatpush1.bf16.msra.mxu0 0
      %1433 = vmatprep.mubr.bf16.mxu0 0
      %1434 = vmatmul.mubr.bf16.gmra.mrb[0].mxu0 %v1276
      %v1435 = vpop.f32.mrb[0].mxu0
      %v1436 = vadd.f32 %v1152, %v1435
      %v1437 = vpop.f32.mrb[0].mxu0
      %v1438 = vadd.f32 %v1156, %v1437
      %v1439 = vpop.f32.mrb[0].mxu0
      %v1440 = vpop.f32.mrb[0].mxu0
      %1441 = vdwg.mxu0
      %1442 = vmatprep.subr.bf16.mxu0 %v1244
      %1443 = vmatpush1.bf16.msra.mxu0 %v1243
      %1444 = vmatprep.subr.bf16.mxu0 %v1254
      %1445 = vmatpush1.bf16.msra.mxu0 %v1253
      %1446 = vmatprep.subr.bf16.mxu0 0
      %1447 = vmatpush1.bf16.msra.mxu0 0
      %1448 = vmatprep.subr.bf16.mxu0 0
      %1449 = vmatpush1.bf16.msra.mxu0 0
      %1450 = vmatprep.subr.bf16.mxu0 0
      %1451 = vmatpush1.bf16.msra.mxu0 0
      %1452 = vmatprep.subr.bf16.mxu0 0
      %1453 = vmatpush1.bf16.msra.mxu0 0
      %1454 = vmatprep.subr.bf16.mxu0 0
      %1455 = vmatpush1.bf16.msra.mxu0 0
      %1456 = vmatprep.subr.bf16.mxu0 0
      %1457 = vmatpush1.bf16.msra.mxu0 0
      %1458 = vmatprep.subr.bf16.mxu0 0
      %1459 = vmatpush1.bf16.msra.mxu0 0
      %1460 = vmatprep.subr.bf16.mxu0 0
      %1461 = vmatpush1.bf16.msra.mxu0 0
      %1462 = vmatprep.subr.bf16.mxu0 0
      %1463 = vmatpush1.bf16.msra.mxu0 0
      %1464 = vmatprep.subr.bf16.mxu0 0
      %1465 = vmatpush1.bf16.msra.mxu0 0
      %1466 = vmatprep.subr.bf16.mxu0 0
      %1467 = vmatpush1.bf16.msra.mxu0 0
      %1468 = vmatprep.subr.bf16.mxu0 0
      %1469 = vmatpush1.bf16.msra.mxu0 0
      %1470 = vmatprep.subr.bf16.mxu0 0
      %1471 = vmatpush1.bf16.msra.mxu0 0
      %1472 = vmatprep.subr.bf16.mxu0 0
      %1473 = vmatpush1.bf16.msra.mxu0 0
      %1474 = vmatprep.mubr.bf16.mxu0 0
      %1475 = vmatmul.mubr.bf16.gmra.mrb[0].mxu0 %v1276
      %v1476 = vpop.f32.mrb[0].mxu0
      %v1477 = vadd.f32 %v1160, %v1476
      %v1478 = vpop.f32.mrb[0].mxu0
      %v1479 = vadd.f32 %v1164, %v1478
      %v1480 = vpop.f32.mrb[0].mxu0
      %v1481 = vpop.f32.mrb[0].mxu0
      %1482 = vdwg.mxu0
      %v1483 = vxor.u32 %v1313, 2147483648
      %v1484 = vxor.u32 %v1315, 2147483648
      %v1485 = vxor.u32 %v1354, 2147483648
      %v1486 = vxor.u32 %v1356, 2147483648
      %v1487 = vxor.u32 %v1395, 2147483648
      %v1488 = vxor.u32 %v1397, 2147483648
      %v1489 = vxor.u32 %v1436, 2147483648
      %v1490 = vxor.u32 %v1438, 2147483648
      %v1491 = vxor.u32 %v1477, 2147483648
      %v1492 = vxor.u32 %v1479, 2147483648
      %v1493 = vmul.f32 %v1483, 1.442695
      %v1494 = vpow.pop %v1493
      %v1495 = vmul.f32 %v1484, 1.442695
      %v1496 = vpow.pop %v1495
      %v1497 = vmul.f32 %v1485, 1.442695
      %v1498 = vpow.pop %v1497
      %v1499 = vmul.f32 %v1486, 1.442695
      %v1500 = vpow.pop %v1499
      %v1501 = vmul.f32 %v1487, 1.442695
      %v1502 = vpow.pop %v1501
      %v1503 = vmul.f32 %v1488, 1.442695
      %v1504 = vpow.pop %v1503
      %v1505 = vmul.f32 %v1489, 1.442695
      %v1506 = vpow.pop %v1505
      %v1507 = vmul.f32 %v1490, 1.442695
      %v1508 = vpow.pop %v1507
      %v1509 = vmul.f32 %v1491, 1.442695
      %v1510 = vpow.pop %v1509
      %v1511 = vmul.f32 %v1492, 1.442695
      %v1512 = vpow.pop %v1511
      %v1513 = vadd.f32 %v1494, 1.0
      %v1514 = vadd.f32 %v1496, 1.0
      %v1515 = vadd.f32 %v1498, 1.0
      %v1516 = vadd.f32 %v1500, 1.0
      %v1517 = vadd.f32 %v1502, 1.0
      %v1518 = vadd.f32 %v1504, 1.0
      %v1519 = vadd.f32 %v1506, 1.0
      %v1520 = vadd.f32 %v1508, 1.0
      %v1521 = vadd.f32 %v1510, 1.0
      %v1522 = vadd.f32 %v1512, 1.0
      %v1523 = vrcp.pop %v1513
      %v1524 = vmul.f32 1.0, %v1523
      %v1525 = vrcp.pop %v1514
      %v1526 = vmul.f32 1.0, %v1525
      %v1527 = vrcp.pop %v1515
      %v1528 = vmul.f32 1.0, %v1527
      %v1529 = vrcp.pop %v1516
      %v1530 = vmul.f32 1.0, %v1529
      %v1531 = vrcp.pop %v1517
      %v1532 = vmul.f32 1.0, %v1531
      %v1533 = vrcp.pop %v1518
      %v1534 = vmul.f32 1.0, %v1533
      %v1535 = vrcp.pop %v1519
      %v1536 = vmul.f32 1.0, %v1535
      %v1537 = vrcp.pop %v1520
      %v1538 = vmul.f32 1.0, %v1537
      %v1539 = vrcp.pop %v1521
      %v1540 = vmul.f32 1.0, %v1539
      %v1541 = vrcp.pop %v1522
      %v1542 = vmul.f32 1.0, %v1541
      %v1543 = vmul.f32 %v1313, %v1524
      %v1544 = vmul.f32 %v1315, %v1526
      %v1545 = vmul.f32 %v1354, %v1528
      %v1546 = vmul.f32 %v1356, %v1530
      %v1547 = vmul.f32 %v1395, %v1532
      %v1548 = vmul.f32 %v1397, %v1534
      %v1549 = vmul.f32 %v1436, %v1536
      %v1550 = vmul.f32 %v1438, %v1538
      %v1551 = vmul.f32 %v1477, %v1540
      %v1552 = vmul.f32 %v1479, %v1542
      %v1553 = vpack.c.bf16 %v1543, %v1543
      %v1554 = vpack.c.bf16 %v1544, %v1544
      %v1555 = vpack.c.bf16 %v1545, %v1545
      %v1556 = vpack.c.bf16 %v1546, %v1546
      %v1557 = vpack.c.bf16 %v1547, %v1547
      %v1558 = vpack.c.bf16 %v1548, %v1548
      %v1559 = vpack.c.bf16 %v1549, %v1549
      %v1560 = vpack.c.bf16 %v1550, %v1550
      %v1561 = vpack.c.bf16 %v1551, %v1551
      %v1562 = vpack.c.bf16 %v1552, %v1552
      %v1563 = vld [vmem:[#allocation3] sm:$0xff]
      %v1564 = vld [vmem:[#allocation3 + $0x8] sm:$0xff]
      %v1565 = vld [vmem:[#allocation3 + $0x10] sm:$0xf]
      %v1569 = vcombine.high %v1563, %v1563
      %v1571 = vunpack.c.l.s4 1983009808
      %v1572 = vunpack.c.0.s8 %v1571
      %v1573 = vlaneseq
      %v1574 = vshrl.u32 %v1573, 7
      %v1575 = vsub.s32 %v1572, %v1574
      %v1576 = vrot.slane %v1563, %v1575
      %v1578 = vunpack.c.l.s4 1983009808
      %v1579 = vunpack.c.0.s8 %v1578
      %v1580 = vlaneseq
      %v1581 = vshrl.u32 %v1580, 7
      %v1582 = vsub.s32 %v1579, %v1581
      %v1583 = vrot.slane %v1569, %v1582
      %v1584 = vcombine.high %v1576, %v1576
      %v1585 = vcombine.high %v1583, %v1583
      %v1586 = vcombine.high %v1564, %v1564
      %v1588 = vunpack.c.l.s4 1983009808
      %v1589 = vunpack.c.0.s8 %v1588
      %v1590 = vlaneseq
      %v1591 = vshrl.u32 %v1590, 7
      %v1592 = vsub.s32 %v1589, %v1591
      %v1593 = vrot.slane %v1564, %v1592
      %v1595 = vunpack.c.l.s4 1983009808
      %v1596 = vunpack.c.0.s8 %v1595
      %v1597 = vlaneseq
      %v1598 = vshrl.u32 %v1597, 7
      %v1599 = vsub.s32 %v1596, %v1598
      %v1600 = vrot.slane %v1586, %v1599
      %v1601 = vcombine.high %v1593, %v1593
      %v1602 = vcombine.high %v1600, %v1600
      %v1604 = vunpack.c.l.s4 1983009808
      %v1605 = vunpack.c.0.s8 %v1604
      %v1606 = vlaneseq
      %v1607 = vshrl.u32 %v1606, 7
      %v1608 = vsub.s32 %v1605, %v1607
      %v1609 = vrot.slane %v1565, %v1608
      %v1610 = vcombine.high %v1609, %v1609
      %1621 = vmatprep.subr.bf16.mxu0 %v1584
      %1622 = vmatpush1.bf16.xpose.msra.mxu0 %v1576
      %1623 = vmatprep.subr.bf16.mxu0 0
      %1624 = vmatpush1.bf16.xpose.msra.mxu0 0
      %1625 = vmatprep.subr.bf16.mxu0 0
      %1626 = vmatpush1.bf16.xpose.msra.mxu0 0
      %1627 = vmatprep.subr.bf16.mxu0 0
      %1628 = vmatpush1.bf16.xpose.msra.mxu0 0
      %1629 = vmatprep.subr.bf16.mxu0 0
      %1630 = vmatpush1.bf16.xpose.msra.mxu0 0
      %1631 = vmatprep.subr.bf16.mxu0 0
      %1632 = vmatpush1.bf16.xpose.msra.mxu0 0
      %1633 = vmatprep.subr.bf16.mxu0 0
      %1634 = vmatpush1.bf16.xpose.msra.mxu0 0
      %1635 = vmatprep.subr.bf16.mxu0 0
      %1636 = vmatpush1.bf16.xpose.msra.mxu0 0
      %1637 = vmatprep.subr.bf16.mxu0 0
      %1638 = vmatpush1.bf16.xpose.msra.mxu0 0
      %1639 = vmatprep.subr.bf16.mxu0 0
      %1640 = vmatpush1.bf16.xpose.msra.mxu0 0
      %1641 = vmatprep.subr.bf16.mxu0 0
      %1642 = vmatpush1.bf16.xpose.msra.mxu0 0
      %1643 = vmatprep.subr.bf16.mxu0 0
      %1644 = vmatpush1.bf16.xpose.msra.mxu0 0
      %1645 = vmatprep.subr.bf16.mxu0 0
      %1646 = vmatpush1.bf16.xpose.msra.mxu0 0
      %1647 = vmatprep.subr.bf16.mxu0 0
      %1648 = vmatpush1.bf16.xpose.msra.mxu0 0
      %1649 = vmatprep.subr.bf16.mxu0 0
      %1650 = vmatpush1.bf16.xpose.msra.mxu0 0
      %1651 = vmatprep.subr.bf16.mxu0 0
      %1652 = vmatpush1.bf16.xpose.msra.mxu0 0
      %1653 = vmatprep.mubr.bf16.mxu0 %v1554
      %1654 = vmatmul.mubr.bf16.gmra.mrb[0].mxu0 %v1553
      %v1655 = vpop.f32.mrb[0].mxu0
      %v1656 = vadd.f32 0.0, %v1655
      %v1657 = vpop.f32.mrb[0].mxu0
      %v1658 = vpop.f32.mrb[0].mxu0
      %v1659 = vpop.f32.mrb[0].mxu0
      %1660 = vdwg.mxu0
      %1661 = vmatprep.subr.bf16.mxu0 %v1585
      %1662 = vmatpush1.bf16.xpose.msra.mxu0 %v1583
      %1663 = vmatprep.subr.bf16.mxu0 0
      %1664 = vmatpush1.bf16.xpose.msra.mxu0 0
      %1665 = vmatprep.subr.bf16.mxu0 0
      %1666 = vmatpush1.bf16.xpose.msra.mxu0 0
      %1667 = vmatprep.subr.bf16.mxu0 0
      %1668 = vmatpush1.bf16.xpose.msra.mxu0 0
      %1669 = vmatprep.subr.bf16.mxu0 0
      %1670 = vmatpush1.bf16.xpose.msra.mxu0 0
      %1671 = vmatprep.subr.bf16.mxu0 0
      %1672 = vmatpush1.bf16.xpose.msra.mxu0 0
      %1673 = vmatprep.subr.bf16.mxu0 0
      %1674 = vmatpush1.bf16.xpose.msra.mxu0 0
      %1675 = vmatprep.subr.bf16.mxu0 0
      %1676 = vmatpush1.bf16.xpose.msra.mxu0 0
      %1677 = vmatprep.subr.bf16.mxu0 0
      %1678 = vmatpush1.bf16.xpose.msra.mxu0 0
      %1679 = vmatprep.subr.bf16.mxu0 0
      %1680 = vmatpush1.bf16.xpose.msra.mxu0 0
      %1681 = vmatprep.subr.bf16.mxu0 0
      %1682 = vmatpush1.bf16.xpose.msra.mxu0 0
      %1683 = vmatprep.subr.bf16.mxu0 0
      %1684 = vmatpush1.bf16.xpose.msra.mxu0 0
      %1685 = vmatprep.subr.bf16.mxu0 0
      %1686 = vmatpush1.bf16.xpose.msra.mxu0 0
      %1687 = vmatprep.subr.bf16.mxu0 0
      %1688 = vmatpush1.bf16.xpose.msra.mxu0 0
      %1689 = vmatprep.subr.bf16.mxu0 0
      %1690 = vmatpush1.bf16.xpose.msra.mxu0 0
      %1691 = vmatprep.subr.bf16.mxu0 0
      %1692 = vmatpush1.bf16.xpose.msra.mxu0 0
      %1693 = vmatprep.mubr.bf16.mxu0 %v1556
      %1694 = vmatmul.mubr.bf16.gmra.mrb[0].mxu0 %v1555
      %v1695 = vpop.f32.mrb[0].mxu0
      %v1696 = vadd.f32 %v1656, %v1695
      %v1697 = vpop.f32.mrb[0].mxu0
      %v1698 = vpop.f32.mrb[0].mxu0
      %v1699 = vpop.f32.mrb[0].mxu0
      %1700 = vdwg.mxu0
      %1701 = vmatprep.subr.bf16.mxu0 %v1601
      %1702 = vmatpush1.bf16.xpose.msra.mxu0 %v1593
      %1703 = vmatprep.subr.bf16.mxu0 0
      %1704 = vmatpush1.bf16.xpose.msra.mxu0 0
      %1705 = vmatprep.subr.bf16.mxu0 0
      %1706 = vmatpush1.bf16.xpose.msra.mxu0 0
      %1707 = vmatprep.subr.bf16.mxu0 0
      %1708 = vmatpush1.bf16.xpose.msra.mxu0 0
      %1709 = vmatprep.subr.bf16.mxu0 0
      %1710 = vmatpush1.bf16.xpose.msra.mxu0 0
      %1711 = vmatprep.subr.bf16.mxu0 0
      %1712 = vmatpush1.bf16.xpose.msra.mxu0 0
      %1713 = vmatprep.subr.bf16.mxu0 0
      %1714 = vmatpush1.bf16.xpose.msra.mxu0 0
      %1715 = vmatprep.subr.bf16.mxu0 0
      %1716 = vmatpush1.bf16.xpose.msra.mxu0 0
      %1717 = vmatprep.subr.bf16.mxu0 0
      %1718 = vmatpush1.bf16.xpose.msra.mxu0 0
      %1719 = vmatprep.subr.bf16.mxu0 0
      %1720 = vmatpush1.bf16.xpose.msra.mxu0 0
      %1721 = vmatprep.subr.bf16.mxu0 0
      %1722 = vmatpush1.bf16.xpose.msra.mxu0 0
      %1723 = vmatprep.subr.bf16.mxu0 0
      %1724 = vmatpush1.bf16.xpose.msra.mxu0 0
      %1725 = vmatprep.subr.bf16.mxu0 0
      %1726 = vmatpush1.bf16.xpose.msra.mxu0 0
      %1727 = vmatprep.subr.bf16.mxu0 0
      %1728 = vmatpush1.bf16.xpose.msra.mxu0 0
      %1729 = vmatprep.subr.bf16.mxu0 0
      %1730 = vmatpush1.bf16.xpose.msra.mxu0 0
      %1731 = vmatprep.subr.bf16.mxu0 0
      %1732 = vmatpush1.bf16.xpose.msra.mxu0 0
      %1733 = vmatprep.mubr.bf16.mxu0 %v1558
      %1734 = vmatmul.mubr.bf16.gmra.mrb[0].mxu0 %v1557
      %v1735 = vpop.f32.mrb[0].mxu0
      %v1736 = vadd.f32 %v1696, %v1735
      %v1737 = vpop.f32.mrb[0].mxu0
      %v1738 = vpop.f32.mrb[0].mxu0
      %v1739 = vpop.f32.mrb[0].mxu0
      %1740 = vdwg.mxu0
      %1741 = vmatprep.subr.bf16.mxu0 %v1602
      %1742 = vmatpush1.bf16.xpose.msra.mxu0 %v1600
      %1743 = vmatprep.subr.bf16.mxu0 0
      %1744 = vmatpush1.bf16.xpose.msra.mxu0 0
      %1745 = vmatprep.subr.bf16.mxu0 0
      %1746 = vmatpush1.bf16.xpose.msra.mxu0 0
      %1747 = vmatprep.subr.bf16.mxu0 0
      %1748 = vmatpush1.bf16.xpose.msra.mxu0 0
      %1749 = vmatprep.subr.bf16.mxu0 0
      %1750 = vmatpush1.bf16.xpose.msra.mxu0 0
      %1751 = vmatprep.subr.bf16.mxu0 0
      %1752 = vmatpush1.bf16.xpose.msra.mxu0 0
      %1753 = vmatprep.subr.bf16.mxu0 0
      %1754 = vmatpush1.bf16.xpose.msra.mxu0 0
      %1755 = vmatprep.subr.bf16.mxu0 0
      %1756 = vmatpush1.bf16.xpose.msra.mxu0 0
      %1757 = vmatprep.subr.bf16.mxu0 0
      %1758 = vmatpush1.bf16.xpose.msra.mxu0 0
      %1759 = vmatprep.subr.bf16.mxu0 0
      %1760 = vmatpush1.bf16.xpose.msra.mxu0 0
      %1761 = vmatprep.subr.bf16.mxu0 0
      %1762 = vmatpush1.bf16.xpose.msra.mxu0 0
      %1763 = vmatprep.subr.bf16.mxu0 0
      %1764 = vmatpush1.bf16.xpose.msra.mxu0 0
      %1765 = vmatprep.subr.bf16.mxu0 0
      %1766 = vmatpush1.bf16.xpose.msra.mxu0 0
      %1767 = vmatprep.subr.bf16.mxu0 0
      %1768 = vmatpush1.bf16.xpose.msra.mxu0 0
      %1769 = vmatprep.subr.bf16.mxu0 0
      %1770 = vmatpush1.bf16.xpose.msra.mxu0 0
      %1771 = vmatprep.subr.bf16.mxu0 0
      %1772 = vmatpush1.bf16.xpose.msra.mxu0 0
      %1773 = vmatprep.mubr.bf16.mxu0 %v1560
      %1774 = vmatmul.mubr.bf16.gmra.mrb[0].mxu0 %v1559
      %v1775 = vpop.f32.mrb[0].mxu0
      %v1776 = vadd.f32 %v1736, %v1775
      %v1777 = vpop.f32.mrb[0].mxu0
      %v1778 = vpop.f32.mrb[0].mxu0
      %v1779 = vpop.f32.mrb[0].mxu0
      %1780 = vdwg.mxu0
      %1781 = vmatprep.subr.bf16.mxu0 %v1610
      %1782 = vmatpush1.bf16.xpose.msra.mxu0 %v1609
      %1783 = vmatprep.subr.bf16.mxu0 0
      %1784 = vmatpush1.bf16.xpose.msra.mxu0 0
      %1785 = vmatprep.subr.bf16.mxu0 0
      %1786 = vmatpush1.bf16.xpose.msra.mxu0 0
      %1787 = vmatprep.subr.bf16.mxu0 0
      %1788 = vmatpush1.bf16.xpose.msra.mxu0 0
      %1789 = vmatprep.subr.bf16.mxu0 0
      %1790 = vmatpush1.bf16.xpose.msra.mxu0 0
      %1791 = vmatprep.subr.bf16.mxu0 0
      %1792 = vmatpush1.bf16.xpose.msra.mxu0 0
      %1793 = vmatprep.subr.bf16.mxu0 0
      %1794 = vmatpush1.bf16.xpose.msra.mxu0 0
      %1795 = vmatprep.subr.bf16.mxu0 0
      %1796 = vmatpush1.bf16.xpose.msra.mxu0 0
      %1797 = vmatprep.subr.bf16.mxu0 0
      %1798 = vmatpush1.bf16.xpose.msra.mxu0 0
      %1799 = vmatprep.subr.bf16.mxu0 0
      %1800 = vmatpush1.bf16.xpose.msra.mxu0 0
      %1801 = vmatprep.subr.bf16.mxu0 0
      %1802 = vmatpush1.bf16.xpose.msra.mxu0 0
      %1803 = vmatprep.subr.bf16.mxu0 0
      %1804 = vmatpush1.bf16.xpose.msra.mxu0 0
      %1805 = vmatprep.subr.bf16.mxu0 0
      %1806 = vmatpush1.bf16.xpose.msra.mxu0 0
      %1807 = vmatprep.subr.bf16.mxu0 0
      %1808 = vmatpush1.bf16.xpose.msra.mxu0 0
      %1809 = vmatprep.subr.bf16.mxu0 0
      %1810 = vmatpush1.bf16.xpose.msra.mxu0 0
      %1811 = vmatprep.subr.bf16.mxu0 0
      %1812 = vmatpush1.bf16.xpose.msra.mxu0 0
      %1813 = vmatprep.mubr.bf16.mxu0 %v1562
      %1814 = vmatmul.mubr.bf16.gmra.mrb[0].mxu0 %v1561
      %v1815 = vpop.f32.mrb[0].mxu0
      %v1816 = vadd.f32 %v1776, %v1815
      %v1817 = vpop.f32.mrb[0].mxu0
      %v1818 = vpop.f32.mrb[0].mxu0
      %v1819 = vpop.f32.mrb[0].mxu0
      %1820 = vdwg.mxu0
      %vm1821 = vcmask 23552
      %1822 = vst.msk [vmem:[%s6] sm:$0xff] %vm1821, %v1816
    $region37: #{tpu_custom_call.1} parent=1 // pred_fallthru
      _
    // Predicated region
    $region38: #{tpu_custom_call.1} parent=1 // pred_check
      _
    $region39: #{tpu_custom_call.1} parent=1 // pred_check_branch
      %1824 = sbr.rel (0) target = $region41
    $region40: #{tpu_custom_call.1} parent=1 // pred_region
      _
    $region41: #{tpu_custom_call.1} parent=1 // pred_fallthru
      _
    // Predicated region
    $region42: #{tpu_custom_call.1} parent=1 // pred_check
      _
    $region43: #{tpu_custom_call.1} parent=1 // pred_check_branch
      %1826 = sbr.rel (0) target = $region45
    $region44: #{tpu_custom_call.1} parent=1 // pred_region
      _
    $region45: #{tpu_custom_call.1} parent=1 // pred_fallthru
      _
    %1827 = vsyncpa [#allocation4], 1

</llo_original>
